<compile_context>
chip_gen: v7x
topology: tpu7x:2x2x1
jax: 0.10.0
libtpu: 0.0.40
codegen_flags: <defaults>
</compile_context>

<pallas_src>
import functools

import jax
import jax.numpy as jnp
from jax import lax
from jax.experimental import pallas as pl
from jax.experimental.pallas import tpu as pltpu

_MASK_VALUE = -1e30  # finite "-inf" for masked logits (exp -> 0, no inf-inf)


def _head_kernel(xq_ref, xkv_ref, wq_ref, wkv_ref, o_ref,
                 q_sc, m_sc, l_sc, acc_sc, *, head_size, block_q, block_k):
    # xq_ref:  (1, tq, C)   query-side x tile
    # xkv_ref: (1, tk, C)   key/value-side x tile
    # wq_ref:  (C, H)       query projection
    # wkv_ref: (C, 2H)      fused key|value projection
    # o_ref:   (1, tq, H)
    qi = pl.program_id(1)
    ki = pl.program_id(2)

    # ---- once per query tile: reset online-softmax state, project scaled q ----
    @pl.when(ki == 0)
    def _init():
        m_sc[...] = jnp.full(m_sc.shape, -jnp.inf, dtype=m_sc.dtype)
        l_sc[...] = jnp.zeros(l_sc.shape, dtype=l_sc.dtype)
        acc_sc[...] = jnp.zeros(acc_sc.shape, dtype=acc_sc.dtype)
        xq = xq_ref[0].astype(jnp.bfloat16)                          # (tq, C)
        q = jnp.dot(xq, wq_ref[...].astype(jnp.bfloat16),
                    preferred_element_type=jnp.float32)              # (tq, H)
        # fold 1/sqrt(H) into q once (tq*H muls instead of tq*tk per KV tile)
        q_sc[...] = (q * (head_size ** -0.5)).astype(jnp.bfloat16)

    # Skip KV tiles that lie strictly above the causal diagonal (fully masked).
    should_compute = ki * block_k <= qi * block_q + (block_q - 1)

    @pl.when(should_compute)
    def _compute():
        xkv = xkv_ref[0].astype(jnp.bfloat16)                        # (tk, C)
        kv = jnp.dot(xkv, wkv_ref[...].astype(jnp.bfloat16),
                     preferred_element_type=jnp.float32)             # (tk, 2H)
        k = kv[:, :head_size].astype(jnp.bfloat16)                   # (tk, H)
        v = kv[:, head_size:].astype(jnp.bfloat16)                   # (tk, H)

        # scores: contract the last dims of q and k (no explicit k.T)
        s = lax.dot_general(q_sc[...], k, (((1,), (1,)), ((), ())),
                            preferred_element_type=jnp.float32)      # (tq, tk)

        # causal mask with global indices
        row = qi * block_q + lax.broadcasted_iota(jnp.int32, (block_q, block_k), 0)
        col = ki * block_k + lax.broadcasted_iota(jnp.int32, (block_q, block_k), 1)
        s = jnp.where(col <= row, s, _MASK_VALUE)

        # online softmax update
        m_prev = m_sc[...]
        m_new = jnp.maximum(m_prev, s.max(axis=-1, keepdims=True))
        alpha = jnp.exp(m_prev - m_new)
        p = jnp.exp(s - m_new)
        l_sc[...] = alpha * l_sc[...] + p.sum(axis=-1, keepdims=True)
        acc_sc[...] = alpha * acc_sc[...] + jnp.dot(
            p.astype(jnp.bfloat16), v, preferred_element_type=jnp.float32)
        m_sc[...] = m_new

    # ---- after the last KV tile: normalize and store --------------------------
    @pl.when(ki == pl.num_programs(2) - 1)
    def _finalize():
        inv_l = pl.reciprocal(l_sc[...], approx=True)
        # NOTE: H=64 < 128 -> masked stores; fusing multiple heads into one call
        # would make the output lane-dense, but this module is a single head.
        o_ref[0] = (acc_sc[...] * inv_l).astype(o_ref.dtype)


def head_forward(x, w_key, w_query, w_value, *, block_q=128, block_k=128):
    """x: (B, T, C) float32; w_*: (C, H) float32 -> (B, T, H)."""
    B, T, C = x.shape
    H = w_key.shape[1]
    tq = min(block_q, T)
    tk = min(block_k, T)
    assert T % tq == 0 and T % tk == 0, "T must be divisible by the tile sizes"
    nq, nk = T // tq, T // tk

    # Fuse key|value projections into one (C, 2H) weight -> one MXU dot per KV tile.
    w_kv = jnp.concatenate([w_key, w_value], axis=1)

    kernel = functools.partial(_head_kernel, head_size=H, block_q=tq, block_k=tk)

    return pl.pallas_call(
        kernel,
        out_shape=jax.ShapeDtypeStruct((B, T, H), x.dtype),
        grid_spec=pltpu.PrefetchScalarGridSpec(
            num_scalar_prefetch=0,
            grid=(B, nq, nk),
            in_specs=[
                pl.BlockSpec((1, tq, C), lambda b, qi, ki: (b, qi, 0)),  # x (q side)
                pl.BlockSpec((1, tk, C), lambda b, qi, ki: (b, ki, 0)),  # x (kv side)
                pl.BlockSpec((C, H), lambda b, qi, ki: (0, 0)),          # w_query
                pl.BlockSpec((C, 2 * H), lambda b, qi, ki: (0, 0)),      # w_key|w_value
            ],
            out_specs=pl.BlockSpec((1, tq, H), lambda b, qi, ki: (b, qi, 0)),
            scratch_shapes=[
                pltpu.VMEM((tq, H), jnp.bfloat16),   # scaled q for current q tile
                pltpu.VMEM((tq, 1), jnp.float32),    # running max
                pltpu.VMEM((tq, 1), jnp.float32),    # running denominator
                pltpu.VMEM((tq, H), jnp.float32),    # output accumulator
            ],
        ),
        compiler_params=pltpu.CompilerParams(
            dimension_semantics=("parallel", "parallel", "arbitrary")),
    )(x, x, w_query, w_kv)


def head_reference(x, w_key, w_query, w_value):
    """Pure-JAX f32 reference mirroring the PyTorch forward (eval mode)."""
    k = x @ w_key
    q = x @ w_query
    v = x @ w_value
    H = k.shape[-1]
    wei = (q @ jnp.swapaxes(k, -2, -1)) * (H ** -0.5)
    T = x.shape[1]
    mask = jnp.tril(jnp.ones((T, T), dtype=bool))
    wei = jnp.where(mask, wei, -jnp.inf)
    wei = jax.nn.softmax(wei, axis=-1)
    return wei @ v


if __name__ == "__main__":
    # Module-natural (but still small) shapes: T = block_size, C = n_embd,
    # head_size = n_embd // 6 as in the GPT-2 script.
    B, T, C, HEAD = 2, 256, 384, 64

    key = jax.random.PRNGKey(0)
    kx, kk, kq, kv = jax.random.split(key, 4)
    x = jax.random.normal(kx, (B, T, C), dtype=jnp.float32)
    # Deterministic "Linear(bias=False)"-style weights, stored as (C, H).
    w_key = jax.random.normal(kk, (C, HEAD), dtype=jnp.float32) * (C ** -0.5)
    w_query = jax.random.normal(kq, (C, HEAD), dtype=jnp.float32) * (C ** -0.5)
    w_value = jax.random.normal(kv, (C, HEAD), dtype=jnp.float32) * (C ** -0.5)

    out = head_forward(x, w_key, w_query, w_value)
    out = jax.block_until_ready(out)

    ref = head_reference(x, w_key, w_query, w_value)
    assert out.shape == (B, T, HEAD)
    # Tolerance accounts for bf16 MXU operands + approx reciprocal in the kernel.
    assert jnp.allclose(out, ref, atol=5e-2, rtol=5e-2), "mismatch vs reference"

    print("KERNEL_OK")
</pallas_src>

<mosaic_0001>
module attributes {stable_mosaic.version = 11 : i64} {
  func.func @_head_kernel(%arg0: i32, %arg1: i32, %arg2: i32, %arg3: memref<1x128x384xf32, #tpu.memory_space<vmem>>, %arg4: memref<1x128x384xf32, #tpu.memory_space<vmem>>, %arg5: memref<384x64xf32, #tpu.memory_space<vmem>>, %arg6: memref<384x128xf32, #tpu.memory_space<vmem>>, %arg7: memref<1x128x64xf32, #tpu.memory_space<vmem>>, %arg8: memref<128x64xbf16, #tpu.memory_space<vmem>>, %arg9: memref<128x1xf32, #tpu.memory_space<vmem>>, %arg10: memref<128x1xf32, #tpu.memory_space<vmem>>, %arg11: memref<128x64xf32, #tpu.memory_space<vmem>>) attributes {dimension_semantics = [#tpu.dimension_semantics<parallel>, #tpu.dimension_semantics<parallel>, #tpu.dimension_semantics<arbitrary>], iteration_bounds = array<i64: 2, 2, 2>, scalar_prefetch = 0 : i64, scratch_operands = 4 : i64, tpu.core_type = #tpu.core_type<tc>, window_params = [{transform_indices = @transform_0, window_bounds = array<i64: 1, 128, 384>}, {transform_indices = @transform_1, window_bounds = array<i64: 1, 128, 384>}, {pipeline_mode = #tpu.pipeline_mode<synchronous>, transform_indices = @transform_2, window_bounds = array<i64: 384, 64>}, {pipeline_mode = #tpu.pipeline_mode<synchronous>, transform_indices = @transform_3, window_bounds = array<i64: 384, 128>}, {transform_indices = @transform_4, window_bounds = array<i64: 1, 128, 64>}]} {
    %c0_i32 = arith.constant 0 : i32
    %0 = arith.cmpi eq, %arg2, %c0_i32 : i32
    %1 = arith.extui %0 : i1 to i32
    %c0_i32_0 = arith.constant 0 : i32
    %2 = arith.cmpi ne, %1, %c0_i32_0 : i32
    scf.if %2 {
      %cst = arith.constant 0xFF800000 : f32
      %12 = vector.broadcast %cst : f32 to vector<128x1xf32>
      %c0 = arith.constant 0 : index
      %c0_4 = arith.constant 0 : index
      %13 = vector.load %arg9[%c0, %c0_4] : memref<128x1xf32, #tpu.memory_space<vmem>>, vector<128x1xf32>
      tpu.vector_store %arg9[%c0, %c0_4], %12 {strides = array<i32>} : memref<128x1xf32, #tpu.memory_space<vmem>>, vector<128x1xf32>,
      %cst_5 = arith.constant 0.000000e+00 : f32
      %14 = vector.broadcast %cst_5 : f32 to vector<128x1xf32>
      %c0_6 = arith.constant 0 : index
      %c0_7 = arith.constant 0 : index
      %15 = vector.load %arg10[%c0_6, %c0_7] : memref<128x1xf32, #tpu.memory_space<vmem>>, vector<128x1xf32>
      tpu.vector_store %arg10[%c0_6, %c0_7], %14 {strides = array<i32>} : memref<128x1xf32, #tpu.memory_space<vmem>>, vector<128x1xf32>,
      %cst_8 = arith.constant 0.000000e+00 : f32
      %16 = vector.broadcast %cst_8 : f32 to vector<128x64xf32>
      %c0_9 = arith.constant 0 : index
      %c0_10 = arith.constant 0 : index
      %17 = vector.load %arg11[%c0_9, %c0_10] : memref<128x64xf32, #tpu.memory_space<vmem>>, vector<128x64xf32>
      tpu.vector_store %arg11[%c0_9, %c0_10], %16 {strides = array<i32>} : memref<128x64xf32, #tpu.memory_space<vmem>>, vector<128x64xf32>,
      %c0_11 = arith.constant 0 : index
      %c0_12 = arith.constant 0 : index
      %c0_13 = arith.constant 0 : index
      %18 = vector.load %arg3[%c0_11, %c0_12, %c0_13] : memref<1x128x384xf32, #tpu.memory_space<vmem>>, vector<1x128x384xf32>
      %19 = vector.shape_cast %18 : vector<1x128x384xf32> to vector<128x384xf32>
      %20 = arith.truncf %19 : vector<128x384xf32> to vector<128x384xbf16>
      %c0_14 = arith.constant 0 : index
      %c0_15 = arith.constant 0 : index
      %21 = vector.load %arg5[%c0_14, %c0_15] : memref<384x64xf32, #tpu.memory_space<vmem>>, vector<384x64xf32>
      %22 = arith.truncf %21 : vector<384x64xf32> to vector<384x64xbf16>
      %cst_16 = arith.constant dense<0.000000e+00> : vector<128x64xf32>
      %23 = tpu.matmul %20, %22, %cst_16 {dimension_numbers = #tpu.dot_dimension_numbers<[1], [0], [0], [1], [0, 0, 1, 1], [], []>} : vector<128x384xbf16>, vector<384x64xbf16>, vector<128x64xf32> -> vector<128x64xf32>
      %cst_17 = arith.constant 1.250000e-01 : f32
      %24 = vector.broadcast %cst_17 : f32 to vector<128x64xf32>
      %25 = arith.mulf %23, %24 : vector<128x64xf32>
      %26 = arith.truncf %25 : vector<128x64xf32> to vector<128x64xbf16>
      %c0_18 = arith.constant 0 : index
      %c0_19 = arith.constant 0 : index
      %27 = vector.load %arg8[%c0_18, %c0_19] : memref<128x64xbf16, #tpu.memory_space<vmem>>, vector<128x64xbf16>
      tpu.vector_store %arg8[%c0_18, %c0_19], %26 {strides = array<i32>} : memref<128x64xbf16, #tpu.memory_space<vmem>>, vector<128x64xbf16>,
    } else {
    }
    %c128_i32 = arith.constant 128 : i32
    %3 = arith.muli %arg2, %c128_i32 : i32
    %c128_i32_1 = arith.constant 128 : i32
    %4 = arith.muli %arg1, %c128_i32_1 : i32
    %c127_i32 = arith.constant 127 : i32
    %5 = arith.addi %4, %c127_i32 : i32
    %6 = arith.cmpi sle, %3, %5 : i32
    %7 = arith.extui %6 : i1 to i32
    %c0_i32_2 = arith.constant 0 : i32
    %8 = arith.cmpi ne, %7, %c0_i32_2 : i32
    scf.if %8 {
      %c0 = arith.constant 0 : index
      %c0_4 = arith.constant 0 : index
      %c0_5 = arith.constant 0 : index
      %12 = vector.load %arg4[%c0, %c0_4, %c0_5] : memref<1x128x384xf32, #tpu.memory_space<vmem>>, vector<1x128x384xf32>
      %13 = vector.shape_cast %12 : vector<1x128x384xf32> to vector<128x384xf32>
      %14 = arith.truncf %13 : vector<128x384xf32> to vector<128x384xbf16>
      %c0_6 = arith.constant 0 : index
      %c0_7 = arith.constant 0 : index
      %15 = vector.load %arg6[%c0_6, %c0_7] : memref<384x128xf32, #tpu.memory_space<vmem>>, vector<384x128xf32>
      %16 = arith.truncf %15 : vector<384x128xf32> to vector<384x128xbf16>
      %cst = arith.constant dense<0.000000e+00> : vector<128x128xf32>
      %17 = tpu.matmul %14, %16, %cst {dimension_numbers = #tpu.dot_dimension_numbers<[1], [0], [0], [1], [0, 0, 1, 1], [], []>} : vector<128x384xbf16>, vector<384x128xbf16>, vector<128x128xf32> -> vector<128x128xf32>
      %18 = vector.extract_strided_slice %17 {offsets = [0, 0], sizes = [128, 64], strides = [1, 1]} : vector<128x128xf32> to vector<128x64xf32>
      %19 = arith.truncf %18 : vector<128x64xf32> to vector<128x64xbf16>
      %20 = vector.extract_strided_slice %17 {offsets = [0, 64], sizes = [128, 64], strides = [1, 1]} : vector<128x128xf32> to vector<128x64xf32>
      %21 = arith.truncf %20 : vector<128x64xf32> to vector<128x64xbf16>
      %c0_8 = arith.constant 0 : index
      %c0_9 = arith.constant 0 : index
      %22 = vector.load %arg8[%c0_8, %c0_9] : memref<128x64xbf16, #tpu.memory_space<vmem>>, vector<128x64xbf16>
      %cst_10 = arith.constant dense<0.000000e+00> : vector<128x128xf32>
      %23 = tpu.matmul %22, %19, %cst_10 {dimension_numbers = #tpu.dot_dimension_numbers<[1], [1], [0], [0], [0, 0, 1, 0], [], []>} : vector<128x64xbf16>, vector<128x64xbf16>, vector<128x128xf32> -> vector<128x128xf32>
      %c128_i32_11 = arith.constant 128 : i32
      %24 = arith.muli %arg1, %c128_i32_11 : i32
      %25 = tpu.iota {dimensions = array<i32: 0>} : vector<128x128xi32>
      %26 = vector.broadcast %24 : i32 to vector<128x128xi32>
      %27 = arith.addi %26, %25 : vector<128x128xi32>
      %c128_i32_12 = arith.constant 128 : i32
      %28 = arith.muli %arg2, %c128_i32_12 : i32
      %29 = tpu.iota {dimensions = array<i32: 1>} : vector<128x128xi32>
      %30 = vector.broadcast %28 : i32 to vector<128x128xi32>
      %31 = arith.addi %30, %29 : vector<128x128xi32>
      %32 = arith.cmpi sle, %31, %27 : vector<128x128xi32>
      %cst_13 = arith.constant -1.000000e+30 : f32
      %33 = vector.broadcast %cst_13 : f32 to vector<128x128xf32>
      %34 = arith.select %32, %23, %33 : vector<128x128xi1>, vector<128x128xf32>
      %c0_14 = arith.constant 0 : index
      %c0_15 = arith.constant 0 : index
      %35 = vector.load %arg9[%c0_14, %c0_15] : memref<128x1xf32, #tpu.memory_space<vmem>>, vector<128x1xf32>
      %cst_16 = arith.constant dense<0xFF800000> : vector<128xf32>
      %36 = vector.multi_reduction <maximumf>, %34, %cst_16 [1] : vector<128x128xf32> to vector<128xf32>
      %37 = vector.shape_cast %36 : vector<128xf32> to vector<128x1xf32>
      %38 = arith.maximumf %35, %37 : vector<128x1xf32>
      %39 = arith.subf %35, %38 : vector<128x1xf32>
      %40 = math.exp %39 : vector<128x1xf32>
      %41 = vector.broadcast %38 : vector<128x1xf32> to vector<128x128xf32>
      %42 = arith.subf %34, %41 : vector<128x128xf32>
      %43 = math.exp %42 : vector<128x128xf32>
      %c0_17 = arith.constant 0 : index
      %c0_18 = arith.constant 0 : index
      %44 = vector.load %arg10[%c0_17, %c0_18] : memref<128x1xf32, #tpu.memory_space<vmem>>, vector<128x1xf32>
      %45 = arith.mulf %40, %44 : vector<128x1xf32>
      %cst_19 = arith.constant dense<0.000000e+00> : vector<128xf32>
      %46 = vector.multi_reduction <add>, %43, %cst_19 [1] : vector<128x128xf32> to vector<128xf32>
      %47 = vector.shape_cast %46 : vector<128xf32> to vector<128x1xf32>
      %48 = arith.addf %45, %47 : vector<128x1xf32>
      %c0_20 = arith.constant 0 : index
      %c0_21 = arith.constant 0 : index
      %49 = vector.load %arg10[%c0_20, %c0_21] : memref<128x1xf32, #tpu.memory_space<vmem>>, vector<128x1xf32>
      tpu.vector_store %arg10[%c0_20, %c0_21], %48 {strides = array<i32>} : memref<128x1xf32, #tpu.memory_space<vmem>>, vector<128x1xf32>,
      %c0_22 = arith.constant 0 : index
      %c0_23 = arith.constant 0 : index
      %50 = vector.load %arg11[%c0_22, %c0_23] : memref<128x64xf32, #tpu.memory_space<vmem>>, vector<128x64xf32>
      %51 = vector.broadcast %40 : vector<128x1xf32> to vector<128x64xf32>
      %52 = arith.mulf %51, %50 : vector<128x64xf32>
      %53 = arith.truncf %43 : vector<128x128xf32> to vector<128x128xbf16>
      %cst_24 = arith.constant dense<0.000000e+00> : vector<128x64xf32>
      %54 = tpu.matmul %53, %21, %cst_24 {dimension_numbers = #tpu.dot_dimension_numbers<[1], [0], [0], [1], [0, 0, 1, 1], [], []>} : vector<128x128xbf16>, vector<128x64xbf16>, vector<128x64xf32> -> vector<128x64xf32>
      %55 = arith.addf %52, %54 : vector<128x64xf32>
      %c0_25 = arith.constant 0 : index
      %c0_26 = arith.constant 0 : index
      %56 = vector.load %arg11[%c0_25, %c0_26] : memref<128x64xf32, #tpu.memory_space<vmem>>, vector<128x64xf32>
      tpu.vector_store %arg11[%c0_25, %c0_26], %55 {strides = array<i32>} : memref<128x64xf32, #tpu.memory_space<vmem>>, vector<128x64xf32>,
      %c0_27 = arith.constant 0 : index
      %c0_28 = arith.constant 0 : index
      %57 = vector.load %arg9[%c0_27, %c0_28] : memref<128x1xf32, #tpu.memory_space<vmem>>, vector<128x1xf32>
      tpu.vector_store %arg9[%c0_27, %c0_28], %38 {strides = array<i32>} : memref<128x1xf32, #tpu.memory_space<vmem>>, vector<128x1xf32>,
    } else {
    }
    %c1_i32 = arith.constant 1 : i32
    %9 = arith.cmpi eq, %arg2, %c1_i32 : i32
    %10 = arith.extui %9 : i1 to i32
    %c0_i32_3 = arith.constant 0 : i32
    %11 = arith.cmpi ne, %10, %c0_i32_3 : i32
    scf.if %11 {
      %c0 = arith.constant 0 : index
      %c0_4 = arith.constant 0 : index
      %12 = vector.load %arg10[%c0, %c0_4] : memref<128x1xf32, #tpu.memory_space<vmem>>, vector<128x1xf32>
      %13 = tpu.reciprocal %12 {approx = true} : vector<128x1xf32> -> vector<128x1xf32>
      %c0_5 = arith.constant 0 : index
      %c0_6 = arith.constant 0 : index
      %14 = vector.load %arg11[%c0_5, %c0_6] : memref<128x64xf32, #tpu.memory_space<vmem>>, vector<128x64xf32>
      %15 = vector.broadcast %13 : vector<128x1xf32> to vector<128x64xf32>
      %16 = arith.mulf %14, %15 : vector<128x64xf32>
      %c0_7 = arith.constant 0 : index
      %c0_8 = arith.constant 0 : index
      %c0_9 = arith.constant 0 : index
      %17 = vector.load %arg7[%c0_7, %c0_8, %c0_9] : memref<1x128x64xf32, #tpu.memory_space<vmem>>, vector<1x128x64xf32>
      %18 = vector.shape_cast %17 : vector<1x128x64xf32> to vector<128x64xf32>
      %19 = vector.shape_cast %16 : vector<128x64xf32> to vector<1x128x64xf32>
      tpu.vector_store %arg7[%c0_7, %c0_8, %c0_9], %19 {strides = array<i32>} : memref<1x128x64xf32, #tpu.memory_space<vmem>>, vector<1x128x64xf32>,
    } else {
    }
    return
  }
  func.func @transform_0(%arg0: i32, %arg1: i32, %arg2: i32) -> (i32, i32, i32) {
    %c0_i32 = arith.constant 0 : i32
    %c0_i32_0 = arith.constant 0 : i32
    return %arg0, %arg1, %c0_i32 : i32, i32, i32
  }
  func.func @transform_1(%arg0: i32, %arg1: i32, %arg2: i32) -> (i32, i32, i32) {
    %c0_i32 = arith.constant 0 : i32
    %c0_i32_0 = arith.constant 0 : i32
    return %arg0, %arg2, %c0_i32 : i32, i32, i32
  }
  func.func @transform_2(%arg0: i32, %arg1: i32, %arg2: i32) -> (i32, i32) {
    %c0_i32 = arith.constant 0 : i32
    %c0_i32_0 = arith.constant 0 : i32
    %c0_i32_1 = arith.constant 0 : i32
    return %c0_i32, %c0_i32_0 : i32, i32
  }
  func.func @transform_3(%arg0: i32, %arg1: i32, %arg2: i32) -> (i32, i32) {
    %c0_i32 = arith.constant 0 : i32
    %c0_i32_0 = arith.constant 0 : i32
    %c0_i32_1 = arith.constant 0 : i32
    return %c0_i32, %c0_i32_0 : i32, i32
  }
  func.func @transform_4(%arg0: i32, %arg1: i32, %arg2: i32) -> (i32, i32, i32) {
    %c0_i32 = arith.constant 0 : i32
    %c0_i32_0 = arith.constant 0 : i32
    return %arg0, %arg1, %c0_i32 : i32, i32, i32
  }
}

</mosaic_0001>

<llo_original>
// kernel: tpu_custom_call.1
$region0: #{tpu_custom_call.1}
  #allocation0 [shape = 'u32[]', space=smem, size = 0x4, offset = 0x4, fixed_abs, tag = 'smem constant byte address 0x4 - core index']
  #allocation1 [shape = 'u32[144,128]{1,0:T(1,128)}', space=vmem, size = 0x12000, scoped, tag = 'internal scratch']
  #allocation2 [shape = 'bf16[128,64]{1,0:T(16,128)(2,1)}', space=vmem, size = 0x8000, scoped, tag = 'scratch operand']
  #allocation3 [shape = 'f32[128,1]{1,0:T(8,128)}', space=vmem, size = 0x10000, scoped, tag = 'scratch operand']
  #allocation4 [shape = 'f32[128,1]{1,0:T(8,128)}', space=vmem, size = 0x10000, scoped, tag = 'scratch operand']
  #allocation5 [shape = 'f32[128,64]{1,0:T(8,128)}', space=vmem, size = 0x10000, scoped, tag = 'scratch operand']
  %s0 = inlined_call_operand.hbm [shape: f32[2,256,384], index: 0, kind: input, shape index: {}]
  %s1 = inlined_call_operand.hbm [shape: f32[2,256,384], index: 1, kind: input, shape index: {}]
  %s2 = inlined_call_operand.vmem [shape: f32[384,64], index: 2, kind: input, shape index: {}]
  %s3 = inlined_call_operand.vmem [shape: f32[384,128], index: 3, kind: input, shape index: {}]
  %s4 = inlined_call_operand.vmem [shape: f32[2,256,64], index: 4, kind: output, shape index: {}]
  %s5 = sld [smem:[#allocation0]]
  $region69: #{tpu_custom_call.1} parent=0
    _
  %s7 = ssub.s32 1, %s5
  %s8 = scalar_select 0, %s7, %s5
  $region1: #{tpu_custom_call.1} parent=0
    #allocation6 [shape = 'u8[393216]{0}', space=vmem, size = 0x60000, scoped, tag = 'input window, operand 0']
    #allocation7 [shape = 's32[2]{0}', space=sflag, size = 0x8, scoped, tag = 'scoped memory for tpu_custom_call.1']
    #allocation8 [shape = 'u8[393216]{0}', space=vmem, size = 0x60000, scoped, tag = 'input window, operand 1']
    #allocation9 [shape = 's32[2]{0}', space=sflag, size = 0x8, scoped, tag = 'scoped memory for tpu_custom_call.1']
    %9 = vsyncpa [#allocation7], 0
    %s10 = scalar_lea.sflag [#allocation7], 1
    %11 = vsyncpa %s10, 0
    %12 = vsyncpa [#allocation9], 0
    %s13 = scalar_lea.sflag [#allocation9], 1
    %14 = vsyncpa %s13, 0
    loop: start=0, step=1, limit=10
    $region2: #{tpu_custom_call.1} parent=1 // loop_pre_header
      _
    $region3: #{tpu_custom_call.1} parent=1 // loop_header
      %s16 = sphi 0, %s20
      %p17 = scmp.ge.s32.totalorder %s16, 10
      %s23 = sphi 0, %s42
      %s24 = sphi 0, %s38
      %s25 = sphi 0, %s34
      %s26 = sphi 0, %s23
      %s27 = sphi 0, %s24
      %s28 = sphi 0, %s25
      %s29 = sphi 0, %s26
      %s30 = sphi 0, %s27
      %s31 = sphi 0, %s28
      %s47 = sphi 0, %s49
      %s50 = sphi 0, %s47
      %s51 = sphi 0, %s50
      %s67 = sphi 0, %s51
      %s75 = sphi 0, %s77
      %s78 = sphi 0, %s75
      %s79 = sphi 0, %s78
      %s95 = sphi 0, %s79
      %s99 = sphi 0, %s99
      %s101 = sphi 0, %s99
      %s102 = sphi 0, %s101
      %s116 = sphi 0, %s102
      %s120 = sphi 0, %s120
      %s122 = sphi 0, %s120
      %s123 = sphi 0, %s122
      %s137 = sphi 0, %s123
      %s145 = sphi 0, %s147
      %s148 = sphi 0, %s145
      %s149 = sphi 0, %s148
      %s165 = sphi 0, %s149
    $region4: #{tpu_custom_call.1} parent=1 // loop_header_branch
      %19 = sbr.rel (%p17) target = $region8
    $region5: #{tpu_custom_call.1} parent=1 // loop_body
      %s21 = ssub.s32 %s16, 1
      %s22 = ssub.s32 %s16, 2
      %s32 = sadd.s32 1, %s25
      %p33 = scmp.ge.s32.totalorder %s32, 2
      %s34 = scalar_select %p33, 0, %s32
      %s35 = sadd.s32 1, %s24
      %s36 = scalar_select %p33, %s35, %s24
      %p37 = scmp.ge.s32.totalorder %s36, 2
      %s38 = scalar_select %p37, 0, %s36
      %s39 = sadd.s32 1, %s23
      %s40 = scalar_select %p37, %s39, %s23
      %p41 = scmp.ge.s32.totalorder %s40, 2
      %s42 = scalar_select %p41, 0, %s40
      %s43 = ssub.s32 %s23, %s42
      %s44 = ssub.s32 %s24, %s38
      %s45 = sor.u32 %s43, %s44
      %p46 = scmp.eq.s32.totalorder %s45, 0
      %s48 = sadd.s32 %s47, 1
      %s49 = scalar_select %p46, %s47, %s48
      %p52 = pneg %p46
      %p53 = scmp.eq.s32.totalorder %s16, 7
      %p54 = por %p52, %p53
      %p55 = scmp.ne.s32.totalorder %s47, %s50
      %p56 = scmp.eq.s32.totalorder %s16, 0
      %p57 = por %p55, %p56
      %p58 = scmp.ne.s32.totalorder %s47, %s50
      %p59 = scmp.eq.s32.totalorder %s21, 7
      %p60 = por %p58, %p59
      %p61 = scmp.ne.s32.totalorder %s50, %s51
      %p62 = scmp.eq.s32.totalorder %s21, 0
      %p63 = por %p61, %p62
      %p64 = scmp.ne.s32.totalorder %s50, %s51
      %p65 = scmp.eq.s32.totalorder %s22, 7
      %p66 = por %p64, %p65
      %p68 = scmp.ne.s32.totalorder %s51, %s67
      %p69 = scmp.eq.s32.totalorder %s22, 0
      %p70 = por %p68, %p69
      %s71 = ssub.s32 %s23, %s42
      %s72 = ssub.s32 %s25, %s34
      %s73 = sor.u32 %s71, %s72
      %p74 = scmp.eq.s32.totalorder %s73, 0
      %s76 = sadd.s32 %s75, 1
      %s77 = scalar_select %p74, %s75, %s76
      %p80 = pneg %p74
      %p81 = scmp.eq.s32.totalorder %s16, 7
      %p82 = por %p80, %p81
      %p83 = scmp.ne.s32.totalorder %s75, %s78
      %p84 = scmp.eq.s32.totalorder %s16, 0
      %p85 = por %p83, %p84
      %p86 = scmp.ne.s32.totalorder %s75, %s78
      %p87 = scmp.eq.s32.totalorder %s21, 7
      %p88 = por %p86, %p87
      %p89 = scmp.ne.s32.totalorder %s78, %s79
      %p90 = scmp.eq.s32.totalorder %s21, 0
      %p91 = por %p89, %p90
      %p92 = scmp.ne.s32.totalorder %s78, %s79
      %p93 = scmp.eq.s32.totalorder %s22, 7
      %p94 = por %p92, %p93
      %p96 = scmp.ne.s32.totalorder %s79, %s95
      %p97 = scmp.eq.s32.totalorder %s22, 0
      %p98 = por %p96, %p97
      %s100 = sadd.s32 %s99, 1
      %p103 = scmp.eq.s32.totalorder %s16, 7
      %p104 = scmp.ne.s32.totalorder %s99, %s101
      %p105 = scmp.eq.s32.totalorder %s16, 0
      %p106 = por %p104, %p105
      %p107 = scmp.ne.s32.totalorder %s99, %s101
      %p108 = scmp.eq.s32.totalorder %s21, 7
      %p109 = por %p107, %p108
      %p110 = scmp.ne.s32.totalorder %s101, %s102
      %p111 = scmp.eq.s32.totalorder %s21, 0
      %p112 = por %p110, %p111
      %p113 = scmp.ne.s32.totalorder %s101, %s102
      %p114 = scmp.eq.s32.totalorder %s22, 7
      %p115 = por %p113, %p114
      %p117 = scmp.ne.s32.totalorder %s102, %s116
      %p118 = scmp.eq.s32.totalorder %s22, 0
      %p119 = por %p117, %p118
      %s121 = sadd.s32 %s120, 1
      %p124 = scmp.eq.s32.totalorder %s16, 7
      %p125 = scmp.ne.s32.totalorder %s120, %s122
      %p126 = scmp.eq.s32.totalorder %s16, 0
      %p127 = por %p125, %p126
      %p128 = scmp.ne.s32.totalorder %s120, %s122
      %p129 = scmp.eq.s32.totalorder %s21, 7
      %p130 = por %p128, %p129
      %p131 = scmp.ne.s32.totalorder %s122, %s123
      %p132 = scmp.eq.s32.totalorder %s21, 0
      %p133 = por %p131, %p132
      %p134 = scmp.ne.s32.totalorder %s122, %s123
      %p135 = scmp.eq.s32.totalorder %s22, 7
      %p136 = por %p134, %p135
      %p138 = scmp.ne.s32.totalorder %s123, %s137
      %p139 = scmp.eq.s32.totalorder %s22, 0
      %p140 = por %p138, %p139
      %s141 = ssub.s32 %s23, %s42
      %s142 = ssub.s32 %s24, %s38
      %s143 = sor.u32 %s141, %s142
      %p144 = scmp.eq.s32.totalorder %s143, 0
      %s146 = sadd.s32 %s145, 1
      %s147 = scalar_select %p144, %s145, %s146
      %p150 = pneg %p144
      %p151 = scmp.eq.s32.totalorder %s16, 7
      %p152 = por %p150, %p151
      %p153 = scmp.ne.s32.totalorder %s145, %s148
      %p154 = scmp.eq.s32.totalorder %s16, 0
      %p155 = por %p153, %p154
      %p156 = scmp.ne.s32.totalorder %s145, %s148
      %p157 = scmp.eq.s32.totalorder %s21, 7
      %p158 = por %p156, %p157
      %p159 = scmp.ne.s32.totalorder %s148, %s149
      %p160 = scmp.eq.s32.totalorder %s21, 0
      %p161 = por %p159, %p160
      %p162 = scmp.ne.s32.totalorder %s148, %s149
      %p163 = scmp.eq.s32.totalorder %s22, 7
      %p164 = por %p162, %p163
      %p166 = scmp.ne.s32.totalorder %s149, %s165
      %p167 = scmp.eq.s32.totalorder %s22, 0
      %p168 = por %p166, %p167
      %p169 = scmp.le.s32.totalorder 1, %s16
      %p170 = scmp.lt.s32.totalorder %s16, 9
      %p171 = pnand %p169, %p170
      %p172 = pneg %p171
      // Predicated region
      $region9: #{tpu_custom_call.1} parent=5 // pred_check
        _
      $region10: #{tpu_custom_call.1} parent=5 // pred_check_branch
        %174 = sbr.rel (%p171) target = $region12
      $region11: #{tpu_custom_call.1} parent=5 // pred_region
        %s175 = ssub.s32 %s16, 1
        // Predicated region
        $region13: #{tpu_custom_call.1} parent=11 // pred_check
          %p176 = pneg %p112
        $region14: #{tpu_custom_call.1} parent=11 // pred_check_branch
          %178 = sbr.rel (%p176) target = $region16
        $region15: #{tpu_custom_call.1} parent=11 // pred_region
          _
        $region16: #{tpu_custom_call.1} parent=11 // pred_fallthru
          _
        // Predicated region
        $region17: #{tpu_custom_call.1} parent=11 // pred_check
          %p179 = pneg %p133
        $region18: #{tpu_custom_call.1} parent=11 // pred_check_branch
          %181 = sbr.rel (%p179) target = $region20
        $region19: #{tpu_custom_call.1} parent=11 // pred_region
          _
        $region20: #{tpu_custom_call.1} parent=11 // pred_fallthru
          _
      $region12: #{tpu_custom_call.1} parent=5 // pred_fallthru
        _
      %p182 = scmp.lt.s32.totalorder %s16, 8
      // Predicated region
      $region21: #{tpu_custom_call.1} parent=5 // pred_check
        %p183 = pneg %p182
      $region22: #{tpu_custom_call.1} parent=5 // pred_check_branch
        %185 = sbr.rel (%p183) target = $region24
      $region23: #{tpu_custom_call.1} parent=5 // pred_region
        // Predicated region
        $region25: #{tpu_custom_call.1} parent=23 // pred_check
          %p186 = pneg %p57
        $region26: #{tpu_custom_call.1} parent=23 // pred_check_branch
          %188 = sbr.rel (%p186) target = $region28
        $region27: #{tpu_custom_call.1} parent=23 // pred_region
          %s189 = sand.u32 %s47, 1
          %s190 = scalar_lea.sflag [#allocation7], %s189
          %s191 = sand.u32 %s47, 1
          %s192 = smul.addr %s191, 384
          %s193 = scalar_lea.vmem [#allocation6], %s192
          %s194 = smul.u32 16, %s24
          %s196 = ssub.s32 6144, 6144
          %197 = vsyncadd %s190, %s196
          %s198 = smul.addr %s194, 3
          %s199 = smul.addr %s23, 96
          %s200 = sadd.s32 %s198, %s199
          %s201 = smul.addr %s200, 128
          %s202 = scalar_lea.hbm %s0, %s201
          %s203 = sshll.u32 %s193, 4
          %s204 = int_to_ptr.vmem [resolvable:$true] %s203
          %209 = dma.hbm_to_vmem [thread:$0]  %s202, 6144, %s204, %s190, 384, 384, 24
        $region28: #{tpu_custom_call.1} parent=23 // pred_fallthru
          _
        // Predicated region
        $region29: #{tpu_custom_call.1} parent=23 // pred_check
          %p210 = pneg %p85
        $region30: #{tpu_custom_call.1} parent=23 // pred_check_branch
          %212 = sbr.rel (%p210) target = $region32
        $region31: #{tpu_custom_call.1} parent=23 // pred_region
          %s213 = sand.u32 %s75, 1
          %s214 = scalar_lea.sflag [#allocation9], %s213
          %s215 = sand.u32 %s75, 1
          %s216 = smul.addr %s215, 384
          %s217 = scalar_lea.vmem [#allocation8], %s216
          %s218 = smul.u32 16, %s25
          %s220 = ssub.s32 6144, 6144
          %221 = vsyncadd %s214, %s220
          %s222 = smul.addr %s218, 3
          %s223 = smul.addr %s23, 96
          %s224 = sadd.s32 %s222, %s223
          %s225 = smul.addr %s224, 128
          %s226 = scalar_lea.hbm %s1, %s225
          %s227 = sshll.u32 %s217, 4
          %s228 = int_to_ptr.vmem [resolvable:$true] %s227
          %233 = dma.hbm_to_vmem [thread:$0]  %s226, 6144, %s228, %s214, 384, 384, 24
        $region32: #{tpu_custom_call.1} parent=23 // pred_fallthru
          _
      $region24: #{tpu_custom_call.1} parent=5 // pred_fallthru
        _
      %p234 = scmp.le.s32.totalorder 1, %s16
      %p235 = scmp.lt.s32.totalorder %s16, 9
      %p236 = pnand %p234, %p235
      %p237 = pneg %p236
      // Predicated region
      $region33: #{tpu_custom_call.1} parent=5 // pred_check
        _
      $region34: #{tpu_custom_call.1} parent=5 // pred_check_branch
        %239 = sbr.rel (%p236) target = $region36
      $region35: #{tpu_custom_call.1} parent=5 // pred_region
        %s240 = ssub.s32 %s16, 1
        %s241 = sand.u32 %s50, 1
        %s242 = scalar_lea.sflag [#allocation7], %s241
        %s243 = sand.u32 %s50, 1
        %s244 = smul.addr %s243, 384
        %s245 = scalar_lea.vmem [#allocation6], %s244
        // Predicated region
        $region37: #{tpu_custom_call.1} parent=35 // pred_check
          %p246 = pneg %p63
        $region38: #{tpu_custom_call.1} parent=35 // pred_check_branch
          %248 = sbr.rel (%p246) target = $region40
        $region39: #{tpu_custom_call.1} parent=35 // pred_region
          %249 = dma.done %s242, 6144
        $region40: #{tpu_custom_call.1} parent=35 // pred_fallthru
          _
        %s250 = sand.u32 %s78, 1
        %s251 = scalar_lea.sflag [#allocation9], %s250
        %s252 = sand.u32 %s78, 1
        %s253 = smul.addr %s252, 384
        %s254 = scalar_lea.vmem [#allocation8], %s253
        // Predicated region
        $region41: #{tpu_custom_call.1} parent=35 // pred_check
          %p255 = pneg %p91
        $region42: #{tpu_custom_call.1} parent=35 // pred_check_branch
          %257 = sbr.rel (%p255) target = $region44
        $region43: #{tpu_custom_call.1} parent=35 // pred_region
          %258 = dma.done %s251, 6144
        $region44: #{tpu_custom_call.1} parent=35 // pred_fallthru
          _
        %s259 = sand.u32 %s50, 1
        %s260 = scalar_lea.sflag [#allocation7], %s259
        %s261 = sand.u32 %s50, 1
        %s262 = smul.addr %s261, 384
        %s263 = scalar_lea.vmem [#allocation6], %s262
        %p264 = pneg %p63
        %p265 = pneg %p60
        %s266 = sand.u32 %s78, 1
        %s267 = scalar_lea.sflag [#allocation9], %s266
        %s268 = sand.u32 %s78, 1
        %s269 = smul.addr %s268, 384
        %s270 = scalar_lea.vmem [#allocation8], %s269
        %p271 = pneg %p91
        %p272 = pneg %p88
        %p273 = pneg %p112
        %p274 = pneg %p109
        %p275 = pneg %p133
        %p276 = pneg %p130
        %p277 = pneg %p161
        %p278 = pneg %p158
        %s279 = smul.u32 16, %s27
        %p280 = scmp.lt.s32.totalorder %s26, 1
        %s281 = scalar_select %p280, %s26, 1
        %p282 = scmp.lt.s32.totalorder %s279, 31
        %s283 = scalar_select %p282, %s279, 31
        %s284 = smul.addr %s281, 32
        %s285 = sadd.s32 %s283, %s284
        %s286 = smul.addr %s285, 8
        %s287 = scalar_lea.vmem %s4, %s286
        %s288 = smul.u32 16, %s27
        %s289 = smul.u32 16, %s28
        %s290 = smul.u32 16, %s27
        %p291 = scmp.lt.s32.totalorder %s26, 1
        %s292 = scalar_select %p291, %s26, 1
        %p293 = scmp.lt.s32.totalorder %s290, 31
        %s294 = scalar_select %p293, %s290, 31
        %s295 = smul.addr %s292, 32
        %s296 = sadd.s32 %s294, %s295
        %s297 = smul.addr %s296, 8
        %s298 = scalar_lea.vmem %s4, %s297
        %s299 = smul.u32 16, %s27
        %p301 = scmp.eq.s32.totalorder %s28, 0
        // Predicated region
        $region45: #{tpu_custom_call.1} parent=35 // pred_check
          %p302 = pneg %p301
        $region46: #{tpu_custom_call.1} parent=35 // pred_check_branch
          %304 = sbr.rel (%p302) target = $region48
        $region47: #{tpu_custom_call.1} parent=35 // pred_region
          %vm305 = vcmask 7168
          %306 = vst.msk [vmem:[#allocation3] sm:$0xff] %vm305, -inf
          %307 = vst.msk [vmem:[#allocation3 + $0x8] sm:$0xff] %vm305, -inf
          %308 = vst.msk [vmem:[#allocation3 + $0x10] sm:$0xff] %vm305, -inf
          %309 = vst.msk [vmem:[#allocation3 + $0x18] sm:$0xff] %vm305, -inf
          %310 = vst.msk [vmem:[#allocation3 + $0x20] sm:$0xff] %vm305, -inf
          %311 = vst.msk [vmem:[#allocation3 + $0x28] sm:$0xff] %vm305, -inf
          %312 = vst.msk [vmem:[#allocation3 + $0x30] sm:$0xff] %vm305, -inf
          %313 = vst.msk [vmem:[#allocation3 + $0x38] sm:$0xff] %vm305, -inf
          %314 = vst.msk [vmem:[#allocation3 + $0x40] sm:$0xff] %vm305, -inf
          %315 = vst.msk [vmem:[#allocation3 + $0x48] sm:$0xff] %vm305, -inf
          %316 = vst.msk [vmem:[#allocation3 + $0x50] sm:$0xff] %vm305, -inf
          %317 = vst.msk [vmem:[#allocation3 + $0x58] sm:$0xff] %vm305, -inf
          %318 = vst.msk [vmem:[#allocation3 + $0x60] sm:$0xff] %vm305, -inf
          %319 = vst.msk [vmem:[#allocation3 + $0x68] sm:$0xff] %vm305, -inf
          %320 = vst.msk [vmem:[#allocation3 + $0x70] sm:$0xff] %vm305, -inf
          %321 = vst.msk [vmem:[#allocation3 + $0x78] sm:$0xff] %vm305, -inf
          %322 = vst.msk [vmem:[#allocation4] sm:$0xff] %vm305, 0.0
          %323 = vst.msk [vmem:[#allocation4 + $0x8] sm:$0xff] %vm305, 0.0
          %324 = vst.msk [vmem:[#allocation4 + $0x10] sm:$0xff] %vm305, 0.0
          %325 = vst.msk [vmem:[#allocation4 + $0x18] sm:$0xff] %vm305, 0.0
          %326 = vst.msk [vmem:[#allocation4 + $0x20] sm:$0xff] %vm305, 0.0
          %327 = vst.msk [vmem:[#allocation4 + $0x28] sm:$0xff] %vm305, 0.0
          %328 = vst.msk [vmem:[#allocation4 + $0x30] sm:$0xff] %vm305, 0.0
          %329 = vst.msk [vmem:[#allocation4 + $0x38] sm:$0xff] %vm305, 0.0
          %330 = vst.msk [vmem:[#allocation4 + $0x40] sm:$0xff] %vm305, 0.0
          %331 = vst.msk [vmem:[#allocation4 + $0x48] sm:$0xff] %vm305, 0.0
          %332 = vst.msk [vmem:[#allocation4 + $0x50] sm:$0xff] %vm305, 0.0
          %333 = vst.msk [vmem:[#allocation4 + $0x58] sm:$0xff] %vm305, 0.0
          %334 = vst.msk [vmem:[#allocation4 + $0x60] sm:$0xff] %vm305, 0.0
          %335 = vst.msk [vmem:[#allocation4 + $0x68] sm:$0xff] %vm305, 0.0
          %336 = vst.msk [vmem:[#allocation4 + $0x70] sm:$0xff] %vm305, 0.0
          %337 = vst.msk [vmem:[#allocation4 + $0x78] sm:$0xff] %vm305, 0.0
          %vm338 = vcmask 523264
          %339 = vst.msk [vmem:[#allocation5] sm:$0xff] %vm338, 0.0
          %340 = vst.msk [vmem:[#allocation5 + $0x8] sm:$0xff] %vm338, 0.0
          %341 = vst.msk [vmem:[#allocation5 + $0x10] sm:$0xff] %vm338, 0.0
          %342 = vst.msk [vmem:[#allocation5 + $0x18] sm:$0xff] %vm338, 0.0
          %343 = vst.msk [vmem:[#allocation5 + $0x20] sm:$0xff] %vm338, 0.0
          %344 = vst.msk [vmem:[#allocation5 + $0x28] sm:$0xff] %vm338, 0.0
          %345 = vst.msk [vmem:[#allocation5 + $0x30] sm:$0xff] %vm338, 0.0
          %346 = vst.msk [vmem:[#allocation5 + $0x38] sm:$0xff] %vm338, 0.0
          %347 = vst.msk [vmem:[#allocation5 + $0x40] sm:$0xff] %vm338, 0.0
          %348 = vst.msk [vmem:[#allocation5 + $0x48] sm:$0xff] %vm338, 0.0
          %349 = vst.msk [vmem:[#allocation5 + $0x50] sm:$0xff] %vm338, 0.0
          %350 = vst.msk [vmem:[#allocation5 + $0x58] sm:$0xff] %vm338, 0.0
          %351 = vst.msk [vmem:[#allocation5 + $0x60] sm:$0xff] %vm338, 0.0
          %352 = vst.msk [vmem:[#allocation5 + $0x68] sm:$0xff] %vm338, 0.0
          %353 = vst.msk [vmem:[#allocation5 + $0x70] sm:$0xff] %vm338, 0.0
          %354 = vst.msk [vmem:[#allocation5 + $0x78] sm:$0xff] %vm338, 0.0
          %v355 = vld [vmem:[%s245] sm:$0xff]
          %v356 = vld [vmem:[%s245 + $0x8] sm:$0xff]
          %v357 = vld [vmem:[%s245 + $0x10] sm:$0xff]
          %v358 = vld [vmem:[%s245 + $0x18] sm:$0xff]
          %v359 = vld [vmem:[%s245 + $0x20] sm:$0xff]
          %v360 = vld [vmem:[%s245 + $0x28] sm:$0xff]
          %v361 = vld [vmem:[%s245 + $0x30] sm:$0xff]
          %v362 = vld [vmem:[%s245 + $0x38] sm:$0xff]
          %v363 = vld [vmem:[%s245 + $0x40] sm:$0xff]
          %v364 = vld [vmem:[%s245 + $0x48] sm:$0xff]
          %v365 = vld [vmem:[%s245 + $0x50] sm:$0xff]
          %v366 = vld [vmem:[%s245 + $0x58] sm:$0xff]
          %v367 = vld [vmem:[%s245 + $0x60] sm:$0xff]
          %v368 = vld [vmem:[%s245 + $0x68] sm:$0xff]
          %v369 = vld [vmem:[%s245 + $0x70] sm:$0xff]
          %v370 = vld [vmem:[%s245 + $0x78] sm:$0xff]
          %v371 = vld [vmem:[%s245 + $0x80] sm:$0xff]
          %v372 = vld [vmem:[%s245 + $0x88] sm:$0xff]
          %v373 = vld [vmem:[%s245 + $0x90] sm:$0xff]
          %v374 = vld [vmem:[%s245 + $0x98] sm:$0xff]
          %v375 = vld [vmem:[%s245 + $0xa0] sm:$0xff]
          %v376 = vld [vmem:[%s245 + $0xa8] sm:$0xff]
          %v377 = vld [vmem:[%s245 + $0xb0] sm:$0xff]
          %v378 = vld [vmem:[%s245 + $0xb8] sm:$0xff]
          %v379 = vld [vmem:[%s245 + $0xc0] sm:$0xff]
          %v380 = vld [vmem:[%s245 + $0xc8] sm:$0xff]
          %v381 = vld [vmem:[%s245 + $0xd0] sm:$0xff]
          %v382 = vld [vmem:[%s245 + $0xd8] sm:$0xff]
          %v383 = vld [vmem:[%s245 + $0xe0] sm:$0xff]
          %v384 = vld [vmem:[%s245 + $0xe8] sm:$0xff]
          %v385 = vld [vmem:[%s245 + $0xf0] sm:$0xff]
          %v386 = vld [vmem:[%s245 + $0xf8] sm:$0xff]
          %v387 = vld [vmem:[%s245 + $0x100] sm:$0xff]
          %v388 = vld [vmem:[%s245 + $0x108] sm:$0xff]
          %v389 = vld [vmem:[%s245 + $0x110] sm:$0xff]
          %v390 = vld [vmem:[%s245 + $0x118] sm:$0xff]
          %v391 = vld [vmem:[%s245 + $0x120] sm:$0xff]
          %v392 = vld [vmem:[%s245 + $0x128] sm:$0xff]
          %v393 = vld [vmem:[%s245 + $0x130] sm:$0xff]
          %v394 = vld [vmem:[%s245 + $0x138] sm:$0xff]
          %v395 = vld [vmem:[%s245 + $0x140] sm:$0xff]
          %v396 = vld [vmem:[%s245 + $0x148] sm:$0xff]
          %v397 = vld [vmem:[%s245 + $0x150] sm:$0xff]
          %v398 = vld [vmem:[%s245 + $0x158] sm:$0xff]
          %v399 = vld [vmem:[%s245 + $0x160] sm:$0xff]
          %v400 = vld [vmem:[%s245 + $0x168] sm:$0xff]
          %v401 = vld [vmem:[%s245 + $0x170] sm:$0xff]
          %v402 = vld [vmem:[%s245 + $0x178] sm:$0xff]
          %v403 = vpack.c.bf16 %v358, %v355
          %v404 = vpack.c.bf16 %v359, %v356
          %v405 = vpack.c.bf16 %v360, %v357
          %v406 = vpack.c.bf16 %v364, %v361
          %v407 = vpack.c.bf16 %v365, %v362
          %v408 = vpack.c.bf16 %v366, %v363
          %v409 = vpack.c.bf16 %v370, %v367
          %v410 = vpack.c.bf16 %v371, %v368
          %v411 = vpack.c.bf16 %v372, %v369
          %v412 = vpack.c.bf16 %v376, %v373
          %v413 = vpack.c.bf16 %v377, %v374
          %v414 = vpack.c.bf16 %v378, %v375
          %v415 = vpack.c.bf16 %v382, %v379
          %v416 = vpack.c.bf16 %v383, %v380
          %v417 = vpack.c.bf16 %v384, %v381
          %v418 = vpack.c.bf16 %v388, %v385
          %v419 = vpack.c.bf16 %v389, %v386
          %v420 = vpack.c.bf16 %v390, %v387
          %v421 = vpack.c.bf16 %v394, %v391
          %v422 = vpack.c.bf16 %v395, %v392
          %v423 = vpack.c.bf16 %v396, %v393
          %v424 = vpack.c.bf16 %v400, %v397
          %v425 = vpack.c.bf16 %v401, %v398
          %v426 = vpack.c.bf16 %v402, %v399
          %v427 = vld [vmem:[%s2] sm:$0xff]
          %v428 = vld [vmem:[%s2 + $0x8] sm:$0xff]
          %v429 = vld [vmem:[%s2 + $0x10] sm:$0xff]
          %v430 = vld [vmem:[%s2 + $0x18] sm:$0xff]
          %v431 = vld [vmem:[%s2 + $0x20] sm:$0xff]
          %v432 = vld [vmem:[%s2 + $0x28] sm:$0xff]
          %v433 = vld [vmem:[%s2 + $0x30] sm:$0xff]
          %v434 = vld [vmem:[%s2 + $0x38] sm:$0xff]
          %v435 = vld [vmem:[%s2 + $0x40] sm:$0xff]
          %v436 = vld [vmem:[%s2 + $0x48] sm:$0xff]
          %v437 = vld [vmem:[%s2 + $0x50] sm:$0xff]
          %v438 = vld [vmem:[%s2 + $0x58] sm:$0xff]
          %v439 = vld [vmem:[%s2 + $0x60] sm:$0xff]
          %v440 = vld [vmem:[%s2 + $0x68] sm:$0xff]
          %v441 = vld [vmem:[%s2 + $0x70] sm:$0xff]
          %v442 = vld [vmem:[%s2 + $0x78] sm:$0xff]
          %v443 = vld [vmem:[%s2 + $0x80] sm:$0xff]
          %v444 = vld [vmem:[%s2 + $0x88] sm:$0xff]
          %v445 = vld [vmem:[%s2 + $0x90] sm:$0xff]
          %v446 = vld [vmem:[%s2 + $0x98] sm:$0xff]
          %v447 = vld [vmem:[%s2 + $0xa0] sm:$0xff]
          %v448 = vld [vmem:[%s2 + $0xa8] sm:$0xff]
          %v449 = vld [vmem:[%s2 + $0xb0] sm:$0xff]
          %v450 = vld [vmem:[%s2 + $0xb8] sm:$0xff]
          %v451 = vld [vmem:[%s2 + $0xc0] sm:$0xff]
          %v452 = vld [vmem:[%s2 + $0xc8] sm:$0xff]
          %v453 = vld [vmem:[%s2 + $0xd0] sm:$0xff]
          %v454 = vld [vmem:[%s2 + $0xd8] sm:$0xff]
          %v455 = vld [vmem:[%s2 + $0xe0] sm:$0xff]
          %v456 = vld [vmem:[%s2 + $0xe8] sm:$0xff]
          %v457 = vld [vmem:[%s2 + $0xf0] sm:$0xff]
          %v458 = vld [vmem:[%s2 + $0xf8] sm:$0xff]
          %v459 = vld [vmem:[%s2 + $0x100] sm:$0xff]
          %v460 = vld [vmem:[%s2 + $0x108] sm:$0xff]
          %v461 = vld [vmem:[%s2 + $0x110] sm:$0xff]
          %v462 = vld [vmem:[%s2 + $0x118] sm:$0xff]
          %v463 = vld [vmem:[%s2 + $0x120] sm:$0xff]
          %v464 = vld [vmem:[%s2 + $0x128] sm:$0xff]
          %v465 = vld [vmem:[%s2 + $0x130] sm:$0xff]
          %v466 = vld [vmem:[%s2 + $0x138] sm:$0xff]
          %v467 = vld [vmem:[%s2 + $0x140] sm:$0xff]
          %v468 = vld [vmem:[%s2 + $0x148] sm:$0xff]
          %v469 = vld [vmem:[%s2 + $0x150] sm:$0xff]
          %v470 = vld [vmem:[%s2 + $0x158] sm:$0xff]
          %v471 = vld [vmem:[%s2 + $0x160] sm:$0xff]
          %v472 = vld [vmem:[%s2 + $0x168] sm:$0xff]
          %v473 = vld [vmem:[%s2 + $0x170] sm:$0xff]
          %v474 = vld [vmem:[%s2 + $0x178] sm:$0xff]
          %v475 = vpack.c.bf16 %v428, %v427
          %v476 = vpack.c.bf16 %v430, %v429
          %v477 = vpack.c.bf16 %v432, %v431
          %v478 = vpack.c.bf16 %v434, %v433
          %v479 = vpack.c.bf16 %v436, %v435
          %v480 = vpack.c.bf16 %v438, %v437
          %v481 = vpack.c.bf16 %v440, %v439
          %v482 = vpack.c.bf16 %v442, %v441
          %v483 = vpack.c.bf16 %v444, %v443
          %v484 = vpack.c.bf16 %v446, %v445
          %v485 = vpack.c.bf16 %v448, %v447
          %v486 = vpack.c.bf16 %v450, %v449
          %v487 = vpack.c.bf16 %v452, %v451
          %v488 = vpack.c.bf16 %v454, %v453
          %v489 = vpack.c.bf16 %v456, %v455
          %v490 = vpack.c.bf16 %v458, %v457
          %v491 = vpack.c.bf16 %v460, %v459
          %v492 = vpack.c.bf16 %v462, %v461
          %v493 = vpack.c.bf16 %v464, %v463
          %v494 = vpack.c.bf16 %v466, %v465
          %v495 = vpack.c.bf16 %v468, %v467
          %v496 = vpack.c.bf16 %v470, %v469
          %v497 = vpack.c.bf16 %v472, %v471
          %v498 = vpack.c.bf16 %v474, %v473
          %499 = vmatprep.subr.bf16.mxu0 0
          %500 = vmatpush1.bf16.msra.mxu0 %v475
          %501 = vmatprep.subr.bf16.mxu0 0
          %502 = vmatpush1.bf16.msra.mxu0 %v476
          %503 = vmatprep.subr.bf16.mxu0 0
          %504 = vmatpush1.bf16.msra.mxu0 %v477
          %505 = vmatprep.subr.bf16.mxu0 0
          %506 = vmatpush1.bf16.msra.mxu0 %v478
          %507 = vmatprep.subr.bf16.mxu0 0
          %508 = vmatpush1.bf16.msra.mxu0 %v479
          %509 = vmatprep.subr.bf16.mxu0 0
          %510 = vmatpush1.bf16.msra.mxu0 %v480
          %511 = vmatprep.subr.bf16.mxu0 0
          %512 = vmatpush1.bf16.msra.mxu0 %v481
          %513 = vmatprep.subr.bf16.mxu0 0
          %514 = vmatpush1.bf16.msra.mxu0 %v482
          %515 = vmatprep.subr.bf16.mxu0 0
          %516 = vmatpush1.bf16.msra.mxu0 %v483
          %517 = vmatprep.subr.bf16.mxu0 0
          %518 = vmatpush1.bf16.msra.mxu0 %v484
          %519 = vmatprep.subr.bf16.mxu0 0
          %520 = vmatpush1.bf16.msra.mxu0 %v485
          %521 = vmatprep.subr.bf16.mxu0 0
          %522 = vmatpush1.bf16.msra.mxu0 %v486
          %523 = vmatprep.subr.bf16.mxu0 0
          %524 = vmatpush1.bf16.msra.mxu0 %v487
          %525 = vmatprep.subr.bf16.mxu0 0
          %526 = vmatpush1.bf16.msra.mxu0 %v488
          %527 = vmatprep.subr.bf16.mxu0 0
          %528 = vmatpush1.bf16.msra.mxu0 %v489
          %529 = vmatprep.subr.bf16.mxu0 0
          %530 = vmatpush1.bf16.msra.mxu0 %v490
          %531 = vmatprep.mubr.bf16.mxu0 %v404
          %532 = vmatmul.mubr.bf16.gmra.mrb[0].mxu0 %v403
          %v533 = vpop.f32.mrb[0].mxu0
          %v534 = vadd.f32 0.0, %v533
          %v535 = vpop.f32.mrb[0].mxu0
          %v536 = vpop.f32.mrb[0].mxu0
          %v537 = vadd.f32 0.0, %v536
          %v538 = vpop.f32.mrb[0].mxu0
          %539 = vmatprep.mubr.bf16.mxu0 %v407
          %540 = vmatmul.mubr.bf16.gmra.mrb[0].mxu0 %v406
          %v541 = vpop.f32.mrb[0].mxu0
          %v542 = vadd.f32 0.0, %v541
          %v543 = vpop.f32.mrb[0].mxu0
          %v544 = vpop.f32.mrb[0].mxu0
          %v545 = vadd.f32 0.0, %v544
          %v546 = vpop.f32.mrb[0].mxu0
          %547 = vmatprep.mubr.bf16.mxu0 %v410
          %548 = vmatmul.mubr.bf16.gmra.mrb[0].mxu0 %v409
          %v549 = vpop.f32.mrb[0].mxu0
          %v550 = vadd.f32 0.0, %v549
          %v551 = vpop.f32.mrb[0].mxu0
          %v552 = vpop.f32.mrb[0].mxu0
          %v553 = vadd.f32 0.0, %v552
          %v554 = vpop.f32.mrb[0].mxu0
          %555 = vmatprep.mubr.bf16.mxu0 %v413
          %556 = vmatmul.mubr.bf16.gmra.mrb[0].mxu0 %v412
          %v557 = vpop.f32.mrb[0].mxu0
          %v558 = vadd.f32 0.0, %v557
          %v559 = vpop.f32.mrb[0].mxu0
          %v560 = vpop.f32.mrb[0].mxu0
          %v561 = vadd.f32 0.0, %v560
          %v562 = vpop.f32.mrb[0].mxu0
          %563 = vmatprep.mubr.bf16.mxu0 %v416
          %564 = vmatmul.mubr.bf16.gmra.mrb[0].mxu0 %v415
          %v565 = vpop.f32.mrb[0].mxu0
          %v566 = vadd.f32 0.0, %v565
          %v567 = vpop.f32.mrb[0].mxu0
          %v568 = vpop.f32.mrb[0].mxu0
          %v569 = vadd.f32 0.0, %v568
          %v570 = vpop.f32.mrb[0].mxu0
          %571 = vmatprep.mubr.bf16.mxu0 %v419
          %572 = vmatmul.mubr.bf16.gmra.mrb[0].mxu0 %v418
          %v573 = vpop.f32.mrb[0].mxu0
          %v574 = vadd.f32 0.0, %v573
          %v575 = vpop.f32.mrb[0].mxu0
          %v576 = vpop.f32.mrb[0].mxu0
          %v577 = vadd.f32 0.0, %v576
          %v578 = vpop.f32.mrb[0].mxu0
          %579 = vmatprep.mubr.bf16.mxu0 %v422
          %580 = vmatmul.mubr.bf16.gmra.mrb[0].mxu0 %v421
          %v581 = vpop.f32.mrb[0].mxu0
          %v582 = vadd.f32 0.0, %v581
          %v583 = vpop.f32.mrb[0].mxu0
          %v584 = vpop.f32.mrb[0].mxu0
          %v585 = vadd.f32 0.0, %v584
          %v586 = vpop.f32.mrb[0].mxu0
          %587 = vmatprep.mubr.bf16.mxu0 %v425
          %588 = vmatmul.mubr.bf16.gmra.mrb[0].mxu0 %v424
          %v589 = vpop.f32.mrb[0].mxu0
          %v590 = vadd.f32 0.0, %v589
          %v591 = vpop.f32.mrb[0].mxu0
          %v592 = vpop.f32.mrb[0].mxu0
          %v593 = vadd.f32 0.0, %v592
          %v594 = vpop.f32.mrb[0].mxu0
          %595 = vdwg.mxu0
          %596 = vmatprep.subr.bf16.mxu0 0
          %597 = vmatpush1.bf16.msra.mxu0 %v491
          %598 = vmatprep.subr.bf16.mxu0 0
          %599 = vmatpush1.bf16.msra.mxu0 %v492
          %600 = vmatprep.subr.bf16.mxu0 0
          %601 = vmatpush1.bf16.msra.mxu0 %v493
          %602 = vmatprep.subr.bf16.mxu0 0
          %603 = vmatpush1.bf16.msra.mxu0 %v494
          %604 = vmatprep.subr.bf16.mxu0 0
          %605 = vmatpush1.bf16.msra.mxu0 %v495
          %606 = vmatprep.subr.bf16.mxu0 0
          %607 = vmatpush1.bf16.msra.mxu0 %v496
          %608 = vmatprep.subr.bf16.mxu0 0
          %609 = vmatpush1.bf16.msra.mxu0 %v497
          %610 = vmatprep.subr.bf16.mxu0 0
          %611 = vmatpush1.bf16.msra.mxu0 %v498
          %612 = vmatprep.subr.bf16.mxu0 0
          %613 = vmatpush1.bf16.msra.mxu0 0
          %614 = vmatprep.subr.bf16.mxu0 0
          %615 = vmatpush1.bf16.msra.mxu0 0
          %616 = vmatprep.subr.bf16.mxu0 0
          %617 = vmatpush1.bf16.msra.mxu0 0
          %618 = vmatprep.subr.bf16.mxu0 0
          %619 = vmatpush1.bf16.msra.mxu0 0
          %620 = vmatprep.subr.bf16.mxu0 0
          %621 = vmatpush1.bf16.msra.mxu0 0
          %622 = vmatprep.subr.bf16.mxu0 0
          %623 = vmatpush1.bf16.msra.mxu0 0
          %624 = vmatprep.subr.bf16.mxu0 0
          %625 = vmatpush1.bf16.msra.mxu0 0
          %626 = vmatprep.subr.bf16.mxu0 0
          %627 = vmatpush1.bf16.msra.mxu0 0
          %628 = vmatprep.mubr.bf16.mxu0 0
          %629 = vmatmul.mubr.bf16.gmra.mrb[0].mxu0 %v405
          %v630 = vpop.f32.mrb[0].mxu0
          %v631 = vadd.f32 %v534, %v630
          %v632 = vpop.f32.mrb[0].mxu0
          %v633 = vpop.f32.mrb[0].mxu0
          %v634 = vadd.f32 %v537, %v633
          %v635 = vpop.f32.mrb[0].mxu0
          %636 = vmatprep.mubr.bf16.mxu0 0
          %637 = vmatmul.mubr.bf16.gmra.mrb[0].mxu0 %v408
          %v638 = vpop.f32.mrb[0].mxu0
          %v639 = vadd.f32 %v542, %v638
          %v640 = vpop.f32.mrb[0].mxu0
          %v641 = vpop.f32.mrb[0].mxu0
          %v642 = vadd.f32 %v545, %v641
          %v643 = vpop.f32.mrb[0].mxu0
          %644 = vmatprep.mubr.bf16.mxu0 0
          %645 = vmatmul.mubr.bf16.gmra.mrb[0].mxu0 %v411
          %v646 = vpop.f32.mrb[0].mxu0
          %v647 = vadd.f32 %v550, %v646
          %v648 = vpop.f32.mrb[0].mxu0
          %v649 = vpop.f32.mrb[0].mxu0
          %v650 = vadd.f32 %v553, %v649
          %v651 = vpop.f32.mrb[0].mxu0
          %652 = vmatprep.mubr.bf16.mxu0 0
          %653 = vmatmul.mubr.bf16.gmra.mrb[0].mxu0 %v414
          %v654 = vpop.f32.mrb[0].mxu0
          %v655 = vadd.f32 %v558, %v654
          %v656 = vpop.f32.mrb[0].mxu0
          %v657 = vpop.f32.mrb[0].mxu0
          %v658 = vadd.f32 %v561, %v657
          %v659 = vpop.f32.mrb[0].mxu0
          %660 = vmatprep.mubr.bf16.mxu0 0
          %661 = vmatmul.mubr.bf16.gmra.mrb[0].mxu0 %v417
          %v662 = vpop.f32.mrb[0].mxu0
          %v663 = vadd.f32 %v566, %v662
          %v664 = vpop.f32.mrb[0].mxu0
          %v665 = vpop.f32.mrb[0].mxu0
          %v666 = vadd.f32 %v569, %v665
          %v667 = vpop.f32.mrb[0].mxu0
          %668 = vmatprep.mubr.bf16.mxu0 0
          %669 = vmatmul.mubr.bf16.gmra.mrb[0].mxu0 %v420
          %v670 = vpop.f32.mrb[0].mxu0
          %v671 = vadd.f32 %v574, %v670
          %v672 = vpop.f32.mrb[0].mxu0
          %v673 = vpop.f32.mrb[0].mxu0
          %v674 = vadd.f32 %v577, %v673
          %v675 = vpop.f32.mrb[0].mxu0
          %676 = vmatprep.mubr.bf16.mxu0 0
          %677 = vmatmul.mubr.bf16.gmra.mrb[0].mxu0 %v423
          %v678 = vpop.f32.mrb[0].mxu0
          %v679 = vadd.f32 %v582, %v678
          %v680 = vpop.f32.mrb[0].mxu0
          %v681 = vpop.f32.mrb[0].mxu0
          %v682 = vadd.f32 %v585, %v681
          %v683 = vpop.f32.mrb[0].mxu0
          %684 = vmatprep.mubr.bf16.mxu0 0
          %685 = vmatmul.mubr.bf16.gmra.mrb[0].mxu0 %v426
          %v686 = vpop.f32.mrb[0].mxu0
          %v687 = vadd.f32 %v590, %v686
          %v688 = vpop.f32.mrb[0].mxu0
          %v689 = vpop.f32.mrb[0].mxu0
          %v690 = vadd.f32 %v593, %v689
          %v691 = vpop.f32.mrb[0].mxu0
          %692 = vdwg.mxu0
          %v693 = vmul.f32 %v631, 0.125
          %v694 = vmul.f32 %v634, 0.125
          %v695 = vmul.f32 %v639, 0.125
          %v696 = vmul.f32 %v642, 0.125
          %v697 = vmul.f32 %v647, 0.125
          %v698 = vmul.f32 %v650, 0.125
          %v699 = vmul.f32 %v655, 0.125
          %v700 = vmul.f32 %v658, 0.125
          %v701 = vmul.f32 %v663, 0.125
          %v702 = vmul.f32 %v666, 0.125
          %v703 = vmul.f32 %v671, 0.125
          %v704 = vmul.f32 %v674, 0.125
          %v705 = vmul.f32 %v679, 0.125
          %v706 = vmul.f32 %v682, 0.125
          %v707 = vmul.f32 %v687, 0.125
          %v708 = vmul.f32 %v690, 0.125
          %v709 = vpack.c.bf16 %v694, %v693
          %v710 = vpack.c.bf16 %v696, %v695
          %v711 = vpack.c.bf16 %v698, %v697
          %v712 = vpack.c.bf16 %v700, %v699
          %v713 = vpack.c.bf16 %v702, %v701
          %v714 = vpack.c.bf16 %v704, %v703
          %v715 = vpack.c.bf16 %v706, %v705
          %v716 = vpack.c.bf16 %v708, %v707
          %717 = vst.msk [vmem:[#allocation2] sm:$0xff] %vm338, %v709
          %718 = vst.msk [vmem:[#allocation2 + $0x8] sm:$0xff] %vm338, %v710
          %719 = vst.msk [vmem:[#allocation2 + $0x10] sm:$0xff] %vm338, %v711
          %720 = vst.msk [vmem:[#allocation2 + $0x18] sm:$0xff] %vm338, %v712
          %721 = vst.msk [vmem:[#allocation2 + $0x20] sm:$0xff] %vm338, %v713
          %722 = vst.msk [vmem:[#allocation2 + $0x28] sm:$0xff] %vm338, %v714
          %723 = vst.msk [vmem:[#allocation2 + $0x30] sm:$0xff] %vm338, %v715
          %724 = vst.msk [vmem:[#allocation2 + $0x38] sm:$0xff] %vm338, %v716
        $region48: #{tpu_custom_call.1} parent=35 // pred_fallthru
          _
        %s725 = smul.u32 %s28, 128
        %s726 = smul.u32 %s27, 128
        %s727 = sadd.s32 %s726, 127
        %p728 = scmp.le.s32.totalorder %s725, %s727
        // Predicated region
        $region49: #{tpu_custom_call.1} parent=35 // pred_check
          %p729 = pneg %p728
        $region50: #{tpu_custom_call.1} parent=35 // pred_check_branch
          %731 = sbr.rel (%p729) target = $region52
        $region51: #{tpu_custom_call.1} parent=35 // pred_region
          %v732 = vld [vmem:[%s254] sm:$0xff]
          %v733 = vld [vmem:[%s254 + $0x8] sm:$0xff]
          %v734 = vld [vmem:[%s254 + $0x10] sm:$0xff]
          %v735 = vld [vmem:[%s254 + $0x18] sm:$0xff]
          %v736 = vld [vmem:[%s254 + $0x20] sm:$0xff]
          %v737 = vld [vmem:[%s254 + $0x28] sm:$0xff]
          %v738 = vld [vmem:[%s254 + $0x30] sm:$0xff]
          %v739 = vld [vmem:[%s254 + $0x38] sm:$0xff]
          %v740 = vld [vmem:[%s254 + $0x40] sm:$0xff]
          %v741 = vld [vmem:[%s254 + $0x48] sm:$0xff]
          %v742 = vld [vmem:[%s254 + $0x50] sm:$0xff]
          %v743 = vld [vmem:[%s254 + $0x58] sm:$0xff]
          %v744 = vld [vmem:[%s254 + $0x60] sm:$0xff]
          %v745 = vld [vmem:[%s254 + $0x68] sm:$0xff]
          %v746 = vld [vmem:[%s254 + $0x70] sm:$0xff]
          %v747 = vld [vmem:[%s254 + $0x78] sm:$0xff]
          %v748 = vld [vmem:[%s254 + $0x80] sm:$0xff]
          %v749 = vld [vmem:[%s254 + $0x88] sm:$0xff]
          %v750 = vld [vmem:[%s254 + $0x90] sm:$0xff]
          %v751 = vld [vmem:[%s254 + $0x98] sm:$0xff]
          %v752 = vld [vmem:[%s254 + $0xa0] sm:$0xff]
          %v753 = vld [vmem:[%s254 + $0xa8] sm:$0xff]
          %v754 = vld [vmem:[%s254 + $0xb0] sm:$0xff]
          %v755 = vld [vmem:[%s254 + $0xb8] sm:$0xff]
          %v756 = vld [vmem:[%s254 + $0xc0] sm:$0xff]
          %v757 = vld [vmem:[%s254 + $0xc8] sm:$0xff]
          %v758 = vld [vmem:[%s254 + $0xd0] sm:$0xff]
          %v759 = vld [vmem:[%s254 + $0xd8] sm:$0xff]
          %v760 = vld [vmem:[%s254 + $0xe0] sm:$0xff]
          %v761 = vld [vmem:[%s254 + $0xe8] sm:$0xff]
          %v762 = vld [vmem:[%s254 + $0xf0] sm:$0xff]
          %v763 = vld [vmem:[%s254 + $0xf8] sm:$0xff]
          %v764 = vld [vmem:[%s254 + $0x100] sm:$0xff]
          %v765 = vld [vmem:[%s254 + $0x108] sm:$0xff]
          %v766 = vld [vmem:[%s254 + $0x110] sm:$0xff]
          %v767 = vld [vmem:[%s254 + $0x118] sm:$0xff]
          %v768 = vld [vmem:[%s254 + $0x120] sm:$0xff]
          %v769 = vld [vmem:[%s254 + $0x128] sm:$0xff]
          %v770 = vld [vmem:[%s254 + $0x130] sm:$0xff]
          %v771 = vld [vmem:[%s254 + $0x138] sm:$0xff]
          %v772 = vld [vmem:[%s254 + $0x140] sm:$0xff]
          %v773 = vld [vmem:[%s254 + $0x148] sm:$0xff]
          %v774 = vld [vmem:[%s254 + $0x150] sm:$0xff]
          %v775 = vld [vmem:[%s254 + $0x158] sm:$0xff]
          %v776 = vld [vmem:[%s254 + $0x160] sm:$0xff]
          %v777 = vld [vmem:[%s254 + $0x168] sm:$0xff]
          %v778 = vld [vmem:[%s254 + $0x170] sm:$0xff]
          %v779 = vld [vmem:[%s254 + $0x178] sm:$0xff]
          %v780 = vpack.c.bf16 %v735, %v732
          %v781 = vpack.c.bf16 %v736, %v733
          %v782 = vpack.c.bf16 %v737, %v734
          %v783 = vpack.c.bf16 %v741, %v738
          %v784 = vpack.c.bf16 %v742, %v739
          %v785 = vpack.c.bf16 %v743, %v740
          %v786 = vpack.c.bf16 %v747, %v744
          %v787 = vpack.c.bf16 %v748, %v745
          %v788 = vpack.c.bf16 %v749, %v746
          %v789 = vpack.c.bf16 %v753, %v750
          %v790 = vpack.c.bf16 %v754, %v751
          %v791 = vpack.c.bf16 %v755, %v752
          %v792 = vpack.c.bf16 %v759, %v756
          %v793 = vpack.c.bf16 %v760, %v757
          %v794 = vpack.c.bf16 %v761, %v758
          %v795 = vpack.c.bf16 %v765, %v762
          %v796 = vpack.c.bf16 %v766, %v763
          %v797 = vpack.c.bf16 %v767, %v764
          %v798 = vpack.c.bf16 %v771, %v768
          %v799 = vpack.c.bf16 %v772, %v769
          %v800 = vpack.c.bf16 %v773, %v770
          %v801 = vpack.c.bf16 %v777, %v774
          %v802 = vpack.c.bf16 %v778, %v775
          %v803 = vpack.c.bf16 %v779, %v776
          %v804 = vld [vmem:[%s3] sm:$0xff]
          %v805 = vld [vmem:[%s3 + $0x8] sm:$0xff]
          %v806 = vld [vmem:[%s3 + $0x10] sm:$0xff]
          %v807 = vld [vmem:[%s3 + $0x18] sm:$0xff]
          %v808 = vld [vmem:[%s3 + $0x20] sm:$0xff]
          %v809 = vld [vmem:[%s3 + $0x28] sm:$0xff]
          %v810 = vld [vmem:[%s3 + $0x30] sm:$0xff]
          %v811 = vld [vmem:[%s3 + $0x38] sm:$0xff]
          %v812 = vld [vmem:[%s3 + $0x40] sm:$0xff]
          %v813 = vld [vmem:[%s3 + $0x48] sm:$0xff]
          %v814 = vld [vmem:[%s3 + $0x50] sm:$0xff]
          %v815 = vld [vmem:[%s3 + $0x58] sm:$0xff]
          %v816 = vld [vmem:[%s3 + $0x60] sm:$0xff]
          %v817 = vld [vmem:[%s3 + $0x68] sm:$0xff]
          %v818 = vld [vmem:[%s3 + $0x70] sm:$0xff]
          %v819 = vld [vmem:[%s3 + $0x78] sm:$0xff]
          %v820 = vld [vmem:[%s3 + $0x80] sm:$0xff]
          %v821 = vld [vmem:[%s3 + $0x88] sm:$0xff]
          %v822 = vld [vmem:[%s3 + $0x90] sm:$0xff]
          %v823 = vld [vmem:[%s3 + $0x98] sm:$0xff]
          %v824 = vld [vmem:[%s3 + $0xa0] sm:$0xff]
          %v825 = vld [vmem:[%s3 + $0xa8] sm:$0xff]
          %v826 = vld [vmem:[%s3 + $0xb0] sm:$0xff]
          %v827 = vld [vmem:[%s3 + $0xb8] sm:$0xff]
          %v828 = vld [vmem:[%s3 + $0xc0] sm:$0xff]
          %v829 = vld [vmem:[%s3 + $0xc8] sm:$0xff]
          %v830 = vld [vmem:[%s3 + $0xd0] sm:$0xff]
          %v831 = vld [vmem:[%s3 + $0xd8] sm:$0xff]
          %v832 = vld [vmem:[%s3 + $0xe0] sm:$0xff]
          %v833 = vld [vmem:[%s3 + $0xe8] sm:$0xff]
          %v834 = vld [vmem:[%s3 + $0xf0] sm:$0xff]
          %v835 = vld [vmem:[%s3 + $0xf8] sm:$0xff]
          %v836 = vld [vmem:[%s3 + $0x100] sm:$0xff]
          %v837 = vld [vmem:[%s3 + $0x108] sm:$0xff]
          %v838 = vld [vmem:[%s3 + $0x110] sm:$0xff]
          %v839 = vld [vmem:[%s3 + $0x118] sm:$0xff]
          %v840 = vld [vmem:[%s3 + $0x120] sm:$0xff]
          %v841 = vld [vmem:[%s3 + $0x128] sm:$0xff]
          %v842 = vld [vmem:[%s3 + $0x130] sm:$0xff]
          %v843 = vld [vmem:[%s3 + $0x138] sm:$0xff]
          %v844 = vld [vmem:[%s3 + $0x140] sm:$0xff]
          %v845 = vld [vmem:[%s3 + $0x148] sm:$0xff]
          %v846 = vld [vmem:[%s3 + $0x150] sm:$0xff]
          %v847 = vld [vmem:[%s3 + $0x158] sm:$0xff]
          %v848 = vld [vmem:[%s3 + $0x160] sm:$0xff]
          %v849 = vld [vmem:[%s3 + $0x168] sm:$0xff]
          %v850 = vld [vmem:[%s3 + $0x170] sm:$0xff]
          %v851 = vld [vmem:[%s3 + $0x178] sm:$0xff]
          %v852 = vpack.c.bf16 %v805, %v804
          %v853 = vpack.c.bf16 %v807, %v806
          %v854 = vpack.c.bf16 %v809, %v808
          %v855 = vpack.c.bf16 %v811, %v810
          %v856 = vpack.c.bf16 %v813, %v812
          %v857 = vpack.c.bf16 %v815, %v814
          %v858 = vpack.c.bf16 %v817, %v816
          %v859 = vpack.c.bf16 %v819, %v818
          %v860 = vpack.c.bf16 %v821, %v820
          %v861 = vpack.c.bf16 %v823, %v822
          %v862 = vpack.c.bf16 %v825, %v824
          %v863 = vpack.c.bf16 %v827, %v826
          %v864 = vpack.c.bf16 %v829, %v828
          %v865 = vpack.c.bf16 %v831, %v830
          %v866 = vpack.c.bf16 %v833, %v832
          %v867 = vpack.c.bf16 %v835, %v834
          %v868 = vpack.c.bf16 %v837, %v836
          %v869 = vpack.c.bf16 %v839, %v838
          %v870 = vpack.c.bf16 %v841, %v840
          %v871 = vpack.c.bf16 %v843, %v842
          %v872 = vpack.c.bf16 %v845, %v844
          %v873 = vpack.c.bf16 %v847, %v846
          %v874 = vpack.c.bf16 %v849, %v848
          %v875 = vpack.c.bf16 %v851, %v850
          %876 = vmatprep.subr.bf16.mxu0 0
          %877 = vmatpush1.bf16.msra.mxu0 %v852
          %878 = vmatprep.subr.bf16.mxu0 0
          %879 = vmatpush1.bf16.msra.mxu0 %v853
          %880 = vmatprep.subr.bf16.mxu0 0
          %881 = vmatpush1.bf16.msra.mxu0 %v854
          %882 = vmatprep.subr.bf16.mxu0 0
          %883 = vmatpush1.bf16.msra.mxu0 %v855
          %884 = vmatprep.subr.bf16.mxu0 0
          %885 = vmatpush1.bf16.msra.mxu0 %v856
          %886 = vmatprep.subr.bf16.mxu0 0
          %887 = vmatpush1.bf16.msra.mxu0 %v857
          %888 = vmatprep.subr.bf16.mxu0 0
          %889 = vmatpush1.bf16.msra.mxu0 %v858
          %890 = vmatprep.subr.bf16.mxu0 0
          %891 = vmatpush1.bf16.msra.mxu0 %v859
          %892 = vmatprep.subr.bf16.mxu0 0
          %893 = vmatpush1.bf16.msra.mxu0 %v860
          %894 = vmatprep.subr.bf16.mxu0 0
          %895 = vmatpush1.bf16.msra.mxu0 %v861
          %896 = vmatprep.subr.bf16.mxu0 0
          %897 = vmatpush1.bf16.msra.mxu0 %v862
          %898 = vmatprep.subr.bf16.mxu0 0
          %899 = vmatpush1.bf16.msra.mxu0 %v863
          %900 = vmatprep.subr.bf16.mxu0 0
          %901 = vmatpush1.bf16.msra.mxu0 %v864
          %902 = vmatprep.subr.bf16.mxu0 0
          %903 = vmatpush1.bf16.msra.mxu0 %v865
          %904 = vmatprep.subr.bf16.mxu0 0
          %905 = vmatpush1.bf16.msra.mxu0 %v866
          %906 = vmatprep.subr.bf16.mxu0 0
          %907 = vmatpush1.bf16.msra.mxu0 %v867
          %908 = vmatprep.mubr.bf16.mxu0 %v781
          %909 = vmatmul.mubr.bf16.gmra.mrb[0].mxu0 %v780
          %v910 = vpop.f32.mrb[0].mxu0
          %v911 = vadd.f32 0.0, %v910
          %v912 = vpop.f32.mrb[0].mxu0
          %v913 = vpop.f32.mrb[0].mxu0
          %v914 = vadd.f32 0.0, %v913
          %v915 = vpop.f32.mrb[0].mxu0
          %916 = vmatprep.mubr.bf16.mxu0 %v784
          %917 = vmatmul.mubr.bf16.gmra.mrb[0].mxu0 %v783
          %v918 = vpop.f32.mrb[0].mxu0
          %v919 = vadd.f32 0.0, %v918
          %v920 = vpop.f32.mrb[0].mxu0
          %v921 = vpop.f32.mrb[0].mxu0
          %v922 = vadd.f32 0.0, %v921
          %v923 = vpop.f32.mrb[0].mxu0
          %924 = vmatprep.mubr.bf16.mxu0 %v787
          %925 = vmatmul.mubr.bf16.gmra.mrb[0].mxu0 %v786
          %v926 = vpop.f32.mrb[0].mxu0
          %v927 = vadd.f32 0.0, %v926
          %v928 = vpop.f32.mrb[0].mxu0
          %v929 = vpop.f32.mrb[0].mxu0
          %v930 = vadd.f32 0.0, %v929
          %v931 = vpop.f32.mrb[0].mxu0
          %932 = vmatprep.mubr.bf16.mxu0 %v790
          %933 = vmatmul.mubr.bf16.gmra.mrb[0].mxu0 %v789
          %v934 = vpop.f32.mrb[0].mxu0
          %v935 = vadd.f32 0.0, %v934
          %v936 = vpop.f32.mrb[0].mxu0
          %v937 = vpop.f32.mrb[0].mxu0
          %v938 = vadd.f32 0.0, %v937
          %v939 = vpop.f32.mrb[0].mxu0
          %940 = vmatprep.mubr.bf16.mxu0 %v793
          %941 = vmatmul.mubr.bf16.gmra.mrb[0].mxu0 %v792
          %v942 = vpop.f32.mrb[0].mxu0
          %v943 = vadd.f32 0.0, %v942
          %v944 = vpop.f32.mrb[0].mxu0
          %v945 = vpop.f32.mrb[0].mxu0
          %v946 = vadd.f32 0.0, %v945
          %v947 = vpop.f32.mrb[0].mxu0
          %948 = vmatprep.mubr.bf16.mxu0 %v796
          %949 = vmatmul.mubr.bf16.gmra.mrb[0].mxu0 %v795
          %v950 = vpop.f32.mrb[0].mxu0
          %v951 = vadd.f32 0.0, %v950
          %v952 = vpop.f32.mrb[0].mxu0
          %v953 = vpop.f32.mrb[0].mxu0
          %v954 = vadd.f32 0.0, %v953
          %v955 = vpop.f32.mrb[0].mxu0
          %956 = vmatprep.mubr.bf16.mxu0 %v799
          %957 = vmatmul.mubr.bf16.gmra.mrb[0].mxu0 %v798
          %v958 = vpop.f32.mrb[0].mxu0
          %v959 = vadd.f32 0.0, %v958
          %v960 = vpop.f32.mrb[0].mxu0
          %v961 = vpop.f32.mrb[0].mxu0
          %v962 = vadd.f32 0.0, %v961
          %v963 = vpop.f32.mrb[0].mxu0
          %964 = vmatprep.mubr.bf16.mxu0 %v802
          %965 = vmatmul.mubr.bf16.gmra.mrb[0].mxu0 %v801
          %v966 = vpop.f32.mrb[0].mxu0
          %v967 = vadd.f32 0.0, %v966
          %v968 = vpop.f32.mrb[0].mxu0
          %v969 = vpop.f32.mrb[0].mxu0
          %v970 = vadd.f32 0.0, %v969
          %v971 = vpop.f32.mrb[0].mxu0
          %972 = vdwg.mxu0
          %973 = vmatprep.subr.bf16.mxu0 0
          %974 = vmatpush1.bf16.msra.mxu0 %v868
          %975 = vmatprep.subr.bf16.mxu0 0
          %976 = vmatpush1.bf16.msra.mxu0 %v869
          %977 = vmatprep.subr.bf16.mxu0 0
          %978 = vmatpush1.bf16.msra.mxu0 %v870
          %979 = vmatprep.subr.bf16.mxu0 0
          %980 = vmatpush1.bf16.msra.mxu0 %v871
          %981 = vmatprep.subr.bf16.mxu0 0
          %982 = vmatpush1.bf16.msra.mxu0 %v872
          %983 = vmatprep.subr.bf16.mxu0 0
          %984 = vmatpush1.bf16.msra.mxu0 %v873
          %985 = vmatprep.subr.bf16.mxu0 0
          %986 = vmatpush1.bf16.msra.mxu0 %v874
          %987 = vmatprep.subr.bf16.mxu0 0
          %988 = vmatpush1.bf16.msra.mxu0 %v875
          %989 = vmatprep.subr.bf16.mxu0 0
          %990 = vmatpush1.bf16.msra.mxu0 0
          %991 = vmatprep.subr.bf16.mxu0 0
          %992 = vmatpush1.bf16.msra.mxu0 0
          %993 = vmatprep.subr.bf16.mxu0 0
          %994 = vmatpush1.bf16.msra.mxu0 0
          %995 = vmatprep.subr.bf16.mxu0 0
          %996 = vmatpush1.bf16.msra.mxu0 0
          %997 = vmatprep.subr.bf16.mxu0 0
          %998 = vmatpush1.bf16.msra.mxu0 0
          %999 = vmatprep.subr.bf16.mxu0 0
          %1000 = vmatpush1.bf16.msra.mxu0 0
          %1001 = vmatprep.subr.bf16.mxu0 0
          %1002 = vmatpush1.bf16.msra.mxu0 0
          %1003 = vmatprep.subr.bf16.mxu0 0
          %1004 = vmatpush1.bf16.msra.mxu0 0
          %1005 = vmatprep.mubr.bf16.mxu0 0
          %1006 = vmatmul.mubr.bf16.gmra.mrb[0].mxu0 %v782
          %v1007 = vpop.f32.mrb[0].mxu0
          %v1008 = vadd.f32 %v911, %v1007
          %v1009 = vpop.f32.mrb[0].mxu0
          %v1010 = vpop.f32.mrb[0].mxu0
          %v1011 = vadd.f32 %v914, %v1010
          %v1012 = vpop.f32.mrb[0].mxu0
          %1013 = vmatprep.mubr.bf16.mxu0 0
          %1014 = vmatmul.mubr.bf16.gmra.mrb[0].mxu0 %v785
          %v1015 = vpop.f32.mrb[0].mxu0
          %v1016 = vadd.f32 %v919, %v1015
          %v1017 = vpop.f32.mrb[0].mxu0
          %v1018 = vpop.f32.mrb[0].mxu0
          %v1019 = vadd.f32 %v922, %v1018
          %v1020 = vpop.f32.mrb[0].mxu0
          %1021 = vmatprep.mubr.bf16.mxu0 0
          %1022 = vmatmul.mubr.bf16.gmra.mrb[0].mxu0 %v788
          %v1023 = vpop.f32.mrb[0].mxu0
          %v1024 = vadd.f32 %v927, %v1023
          %v1025 = vpop.f32.mrb[0].mxu0
          %v1026 = vpop.f32.mrb[0].mxu0
          %v1027 = vadd.f32 %v930, %v1026
          %v1028 = vpop.f32.mrb[0].mxu0
          %1029 = vmatprep.mubr.bf16.mxu0 0
          %1030 = vmatmul.mubr.bf16.gmra.mrb[0].mxu0 %v791
          %v1031 = vpop.f32.mrb[0].mxu0
          %v1032 = vadd.f32 %v935, %v1031
          %v1033 = vpop.f32.mrb[0].mxu0
          %v1034 = vpop.f32.mrb[0].mxu0
          %v1035 = vadd.f32 %v938, %v1034
          %v1036 = vpop.f32.mrb[0].mxu0
          %1037 = vmatprep.mubr.bf16.mxu0 0
          %1038 = vmatmul.mubr.bf16.gmra.mrb[0].mxu0 %v794
          %v1039 = vpop.f32.mrb[0].mxu0
          %v1040 = vadd.f32 %v943, %v1039
          %v1041 = vpop.f32.mrb[0].mxu0
          %v1042 = vpop.f32.mrb[0].mxu0
          %v1043 = vadd.f32 %v946, %v1042
          %v1044 = vpop.f32.mrb[0].mxu0
          %1045 = vmatprep.mubr.bf16.mxu0 0
          %1046 = vmatmul.mubr.bf16.gmra.mrb[0].mxu0 %v797
          %v1047 = vpop.f32.mrb[0].mxu0
          %v1048 = vadd.f32 %v951, %v1047
          %v1049 = vpop.f32.mrb[0].mxu0
          %v1050 = vpop.f32.mrb[0].mxu0
          %v1051 = vadd.f32 %v954, %v1050
          %v1052 = vpop.f32.mrb[0].mxu0
          %1053 = vmatprep.mubr.bf16.mxu0 0
          %1054 = vmatmul.mubr.bf16.gmra.mrb[0].mxu0 %v800
          %v1055 = vpop.f32.mrb[0].mxu0
          %v1056 = vadd.f32 %v959, %v1055
          %v1057 = vpop.f32.mrb[0].mxu0
          %v1058 = vpop.f32.mrb[0].mxu0
          %v1059 = vadd.f32 %v962, %v1058
          %v1060 = vpop.f32.mrb[0].mxu0
          %1061 = vmatprep.mubr.bf16.mxu0 0
          %1062 = vmatmul.mubr.bf16.gmra.mrb[0].mxu0 %v803
          %v1063 = vpop.f32.mrb[0].mxu0
          %v1064 = vadd.f32 %v967, %v1063
          %v1065 = vpop.f32.mrb[0].mxu0
          %v1066 = vpop.f32.mrb[0].mxu0
          %v1067 = vadd.f32 %v970, %v1066
          %v1068 = vpop.f32.mrb[0].mxu0
          %1069 = vdwg.mxu0
          %v1070 = vpack.c.bf16 %v1011, %v1008
          %v1071 = vpack.c.bf16 %v1019, %v1016
          %v1072 = vpack.c.bf16 %v1027, %v1024
          %v1073 = vpack.c.bf16 %v1035, %v1032
          %v1074 = vpack.c.bf16 %v1043, %v1040
          %v1075 = vpack.c.bf16 %v1051, %v1048
          %v1076 = vpack.c.bf16 %v1059, %v1056
          %v1077 = vpack.c.bf16 %v1067, %v1064
          %v1078 = vld [vmem:[#allocation2] sm:$0xff]
          %v1079 = vld [vmem:[#allocation2 + $0x8] sm:$0xff]
          %v1080 = vld [vmem:[#allocation2 + $0x10] sm:$0xff]
          %v1081 = vld [vmem:[#allocation2 + $0x18] sm:$0xff]
          %v1082 = vld [vmem:[#allocation2 + $0x20] sm:$0xff]
          %v1083 = vld [vmem:[#allocation2 + $0x28] sm:$0xff]
          %v1084 = vld [vmem:[#allocation2 + $0x30] sm:$0xff]
          %v1085 = vld [vmem:[#allocation2 + $0x38] sm:$0xff]
          %vm1086 = vcmask 523264
          %v1088 = vsel %vm1086, %v1078, 0
          %v1091 = vsel %vm1086, %v1079, 0
          %v1094 = vsel %vm1086, %v1080, 0
          %v1097 = vsel %vm1086, %v1081, 0
          %v1100 = vsel %vm1086, %v1082, 0
          %v1103 = vsel %vm1086, %v1083, 0
          %v1106 = vsel %vm1086, %v1084, 0
          %v1109 = vsel %vm1086, %v1085, 0
          %v1112 = vsel %vm1086, %v1070, 0
          %v1115 = vsel %vm1086, %v1071, 0
          %v1118 = vsel %vm1086, %v1072, 0
          %v1121 = vsel %vm1086, %v1073, 0
          %v1124 = vsel %vm1086, %v1074, 0
          %v1127 = vsel %vm1086, %v1075, 0
          %v1130 = vsel %vm1086, %v1076, 0
          %v1133 = vsel %vm1086, %v1077, 0
          %1135 = vmatprep.subr.bf16.mxu0 0
          %1136 = vmatpush1.bf16.xpose.msra.mxu0 %v1112
          %1137 = vmatprep.subr.bf16.mxu0 0
          %1138 = vmatpush1.bf16.xpose.msra.mxu0 %v1115
          %1139 = vmatprep.subr.bf16.mxu0 0
          %1140 = vmatpush1.bf16.xpose.msra.mxu0 %v1118
          %1141 = vmatprep.subr.bf16.mxu0 0
          %1142 = vmatpush1.bf16.xpose.msra.mxu0 %v1121
          %1143 = vmatprep.subr.bf16.mxu0 0
          %1144 = vmatpush1.bf16.xpose.msra.mxu0 %v1124
          %1145 = vmatprep.subr.bf16.mxu0 0
          %1146 = vmatpush1.bf16.xpose.msra.mxu0 %v1127
          %1147 = vmatprep.subr.bf16.mxu0 0
          %1148 = vmatpush1.bf16.xpose.msra.mxu0 %v1130
          %1149 = vmatprep.subr.bf16.mxu0 0
          %1150 = vmatpush1.bf16.xpose.msra.mxu0 %v1133
          %1151 = vmatprep.subr.bf16.mxu0 0
          %1152 = vmatpush1.bf16.xpose.msra.mxu0 0
          %1153 = vmatprep.subr.bf16.mxu0 0
          %1154 = vmatpush1.bf16.xpose.msra.mxu0 0
          %1155 = vmatprep.subr.bf16.mxu0 0
          %1156 = vmatpush1.bf16.xpose.msra.mxu0 0
          %1157 = vmatprep.subr.bf16.mxu0 0
          %1158 = vmatpush1.bf16.xpose.msra.mxu0 0
          %1159 = vmatprep.subr.bf16.mxu0 0
          %1160 = vmatpush1.bf16.xpose.msra.mxu0 0
          %1161 = vmatprep.subr.bf16.mxu0 0
          %1162 = vmatpush1.bf16.xpose.msra.mxu0 0
          %1163 = vmatprep.subr.bf16.mxu0 0
          %1164 = vmatpush1.bf16.xpose.msra.mxu0 0
          %1165 = vmatprep.subr.bf16.mxu0 0
          %1166 = vmatpush1.bf16.xpose.msra.mxu0 0
          %1167 = vmatprep.mubr.bf16.mxu0 0
          %1168 = vmatmul.mubr.bf16.gmra.mrb[0].mxu0 %v1088
          %v1169 = vpop.f32.mrb[0].mxu0
          %v1170 = vadd.f32 0.0, %v1169
          %v1171 = vpop.f32.mrb[0].mxu0
          %v1172 = vpop.f32.mrb[0].mxu0
          %v1173 = vadd.f32 0.0, %v1172
          %v1174 = vpop.f32.mrb[0].mxu0
          %1175 = vmatprep.mubr.bf16.mxu0 0
          %1176 = vmatmul.mubr.bf16.gmra.mrb[0].mxu0 %v1091
          %v1177 = vpop.f32.mrb[0].mxu0
          %v1178 = vadd.f32 0.0, %v1177
          %v1179 = vpop.f32.mrb[0].mxu0
          %v1180 = vpop.f32.mrb[0].mxu0
          %v1181 = vadd.f32 0.0, %v1180
          %v1182 = vpop.f32.mrb[0].mxu0
          %1183 = vmatprep.mubr.bf16.mxu0 0
          %1184 = vmatmul.mubr.bf16.gmra.mrb[0].mxu0 %v1094
          %v1185 = vpop.f32.mrb[0].mxu0
          %v1186 = vadd.f32 0.0, %v1185
          %v1187 = vpop.f32.mrb[0].mxu0
          %v1188 = vpop.f32.mrb[0].mxu0
          %v1189 = vadd.f32 0.0, %v1188
          %v1190 = vpop.f32.mrb[0].mxu0
          %1191 = vmatprep.mubr.bf16.mxu0 0
          %1192 = vmatmul.mubr.bf16.gmra.mrb[0].mxu0 %v1097
          %v1193 = vpop.f32.mrb[0].mxu0
          %v1194 = vadd.f32 0.0, %v1193
          %v1195 = vpop.f32.mrb[0].mxu0
          %v1196 = vpop.f32.mrb[0].mxu0
          %v1197 = vadd.f32 0.0, %v1196
          %v1198 = vpop.f32.mrb[0].mxu0
          %1199 = vmatprep.mubr.bf16.mxu0 0
          %1200 = vmatmul.mubr.bf16.gmra.mrb[0].mxu0 %v1100
          %v1201 = vpop.f32.mrb[0].mxu0
          %v1202 = vadd.f32 0.0, %v1201
          %v1203 = vpop.f32.mrb[0].mxu0
          %v1204 = vpop.f32.mrb[0].mxu0
          %v1205 = vadd.f32 0.0, %v1204
          %v1206 = vpop.f32.mrb[0].mxu0
          %1207 = vmatprep.mubr.bf16.mxu0 0
          %1208 = vmatmul.mubr.bf16.gmra.mrb[0].mxu0 %v1103
          %v1209 = vpop.f32.mrb[0].mxu0
          %v1210 = vadd.f32 0.0, %v1209
          %v1211 = vpop.f32.mrb[0].mxu0
          %v1212 = vpop.f32.mrb[0].mxu0
          %v1213 = vadd.f32 0.0, %v1212
          %v1214 = vpop.f32.mrb[0].mxu0
          %1215 = vmatprep.mubr.bf16.mxu0 0
          %1216 = vmatmul.mubr.bf16.gmra.mrb[0].mxu0 %v1106
          %v1217 = vpop.f32.mrb[0].mxu0
          %v1218 = vadd.f32 0.0, %v1217
          %v1219 = vpop.f32.mrb[0].mxu0
          %v1220 = vpop.f32.mrb[0].mxu0
          %v1221 = vadd.f32 0.0, %v1220
          %v1222 = vpop.f32.mrb[0].mxu0
          %1223 = vmatprep.mubr.bf16.mxu0 0
          %1224 = vmatmul.mubr.bf16.gmra.mrb[0].mxu0 %v1109
          %v1225 = vpop.f32.mrb[0].mxu0
          %v1226 = vadd.f32 0.0, %v1225
          %v1227 = vpop.f32.mrb[0].mxu0
          %v1228 = vpop.f32.mrb[0].mxu0
          %v1229 = vadd.f32 0.0, %v1228
          %v1230 = vpop.f32.mrb[0].mxu0
          %1231 = vdwg.mxu0
          %v1232 = vlaneseq
          %v1233 = vshrl.u32 %v1232, 7
          %v1234 = vadd.s32 %v1233, 8
          %v1235 = vadd.s32 %v1233, 16
          %v1236 = vadd.s32 %v1233, 24
          %v1237 = vadd.s32 %v1233, 32
          %v1238 = vadd.s32 %v1233, 40
          %v1239 = vadd.s32 %v1233, 48
          %v1240 = vadd.s32 %v1233, 56
          %v1241 = vadd.s32 %v1233, 64
          %v1242 = vadd.s32 %v1233, 72
          %v1243 = vadd.s32 %v1233, 80
          %v1244 = vadd.s32 %v1233, 88
          %v1245 = vadd.s32 %v1233, 96
          %v1246 = vadd.s32 %v1233, 104
          %v1247 = vadd.s32 %v1233, 112
          %v1248 = vadd.s32 %v1233, 120
          %v1249 = vstv %s726
          %v1250 = vadd.s32 %v1249, %v1233
          %v1251 = vadd.s32 %v1249, %v1234
          %v1252 = vadd.s32 %v1249, %v1235
          %v1253 = vadd.s32 %v1249, %v1236
          %v1254 = vadd.s32 %v1249, %v1237
          %v1255 = vadd.s32 %v1249, %v1238
          %v1256 = vadd.s32 %v1249, %v1239
          %v1257 = vadd.s32 %v1249, %v1240
          %v1258 = vadd.s32 %v1249, %v1241
          %v1259 = vadd.s32 %v1249, %v1242
          %v1260 = vadd.s32 %v1249, %v1243
          %v1261 = vadd.s32 %v1249, %v1244
          %v1262 = vadd.s32 %v1249, %v1245
          %v1263 = vadd.s32 %v1249, %v1246
          %v1264 = vadd.s32 %v1249, %v1247
          %v1265 = vadd.s32 %v1249, %v1248
          %v1266 = vlaneseq
          %v1267 = vand.u32 %v1266, 127
          %v1268 = vstv %s725
          %v1269 = vadd.s32 %v1268, %v1267
          %vm1270 = vcmp.le.s32.totalorder %v1269, %v1250
          %vm1271 = vcmp.le.s32.totalorder %v1269, %v1251
          %vm1272 = vcmp.le.s32.totalorder %v1269, %v1252
          %vm1273 = vcmp.le.s32.totalorder %v1269, %v1253
          %vm1274 = vcmp.le.s32.totalorder %v1269, %v1254
          %vm1275 = vcmp.le.s32.totalorder %v1269, %v1255
          %vm1276 = vcmp.le.s32.totalorder %v1269, %v1256
          %vm1277 = vcmp.le.s32.totalorder %v1269, %v1257
          %vm1278 = vcmp.le.s32.totalorder %v1269, %v1258
          %vm1279 = vcmp.le.s32.totalorder %v1269, %v1259
          %vm1280 = vcmp.le.s32.totalorder %v1269, %v1260
          %vm1281 = vcmp.le.s32.totalorder %v1269, %v1261
          %vm1282 = vcmp.le.s32.totalorder %v1269, %v1262
          %vm1283 = vcmp.le.s32.totalorder %v1269, %v1263
          %vm1284 = vcmp.le.s32.totalorder %v1269, %v1264
          %vm1285 = vcmp.le.s32.totalorder %v1269, %v1265
          %v1286 = vsel %vm1270, %v1170, -1e+30
          %v1287 = vsel %vm1271, %v1173, -1e+30
          %v1288 = vsel %vm1272, %v1178, -1e+30
          %v1289 = vsel %vm1273, %v1181, -1e+30
          %v1290 = vsel %vm1274, %v1186, -1e+30
          %v1291 = vsel %vm1275, %v1189, -1e+30
          %v1292 = vsel %vm1276, %v1194, -1e+30
          %v1293 = vsel %vm1277, %v1197, -1e+30
          %v1294 = vsel %vm1278, %v1202, -1e+30
          %v1295 = vsel %vm1279, %v1205, -1e+30
          %v1296 = vsel %vm1280, %v1210, -1e+30
          %v1297 = vsel %vm1281, %v1213, -1e+30
          %v1298 = vsel %vm1282, %v1218, -1e+30
          %v1299 = vsel %vm1283, %v1221, -1e+30
          %v1300 = vsel %vm1284, %v1226, -1e+30
          %v1301 = vsel %vm1285, %v1229, -1e+30
          %v1302 = vld [vmem:[#allocation3] sm:$0xff]
          %v1303 = vld [vmem:[#allocation3 + $0x8] sm:$0xff]
          %v1304 = vld [vmem:[#allocation3 + $0x10] sm:$0xff]
          %v1305 = vld [vmem:[#allocation3 + $0x18] sm:$0xff]
          %v1306 = vld [vmem:[#allocation3 + $0x20] sm:$0xff]
          %v1307 = vld [vmem:[#allocation3 + $0x28] sm:$0xff]
          %v1308 = vld [vmem:[#allocation3 + $0x30] sm:$0xff]
          %v1309 = vld [vmem:[#allocation3 + $0x38] sm:$0xff]
          %v1310 = vld [vmem:[#allocation3 + $0x40] sm:$0xff]
          %v1311 = vld [vmem:[#allocation3 + $0x48] sm:$0xff]
          %v1312 = vld [vmem:[#allocation3 + $0x50] sm:$0xff]
          %v1313 = vld [vmem:[#allocation3 + $0x58] sm:$0xff]
          %v1314 = vld [vmem:[#allocation3 + $0x60] sm:$0xff]
          %v1315 = vld [vmem:[#allocation3 + $0x68] sm:$0xff]
          %v1316 = vld [vmem:[#allocation3 + $0x70] sm:$0xff]
          %v1317 = vld [vmem:[#allocation3 + $0x78] sm:$0xff]
          %1318 = vmax.xlane.f32.xlu0 %v1286
          %v1319 = vpop.xlane.xlu0 %1318
          %1320 = vmax.xlane.f32.xlu0 %v1287
          %v1321 = vpop.xlane.xlu0 %1320
          %1322 = vmax.xlane.f32.xlu0 %v1288
          %v1323 = vpop.xlane.xlu0 %1322
          %1324 = vmax.xlane.f32.xlu0 %v1289
          %v1325 = vpop.xlane.xlu0 %1324
          %1326 = vmax.xlane.f32.xlu0 %v1290
          %v1327 = vpop.xlane.xlu0 %1326
          %1328 = vmax.xlane.f32.xlu0 %v1291
          %v1329 = vpop.xlane.xlu0 %1328
          %1330 = vmax.xlane.f32.xlu0 %v1292
          %v1331 = vpop.xlane.xlu0 %1330
          %1332 = vmax.xlane.f32.xlu0 %v1293
          %v1333 = vpop.xlane.xlu0 %1332
          %1334 = vmax.xlane.f32.xlu0 %v1294
          %v1335 = vpop.xlane.xlu0 %1334
          %1336 = vmax.xlane.f32.xlu0 %v1295
          %v1337 = vpop.xlane.xlu0 %1336
          %1338 = vmax.xlane.f32.xlu0 %v1296
          %v1339 = vpop.xlane.xlu0 %1338
          %1340 = vmax.xlane.f32.xlu0 %v1297
          %v1341 = vpop.xlane.xlu0 %1340
          %1342 = vmax.xlane.f32.xlu0 %v1298
          %v1343 = vpop.xlane.xlu0 %1342
          %1344 = vmax.xlane.f32.xlu0 %v1299
          %v1345 = vpop.xlane.xlu0 %1344
          %1346 = vmax.xlane.f32.xlu0 %v1300
          %v1347 = vpop.xlane.xlu0 %1346
          %1348 = vmax.xlane.f32.xlu0 %v1301
          %v1349 = vpop.xlane.xlu0 %1348
          %v1350 = vmax.f32 %v1302, %v1319
          %v1351 = vmax.f32 %v1303, %v1321
          %v1352 = vmax.f32 %v1304, %v1323
          %v1353 = vmax.f32 %v1305, %v1325
          %v1354 = vmax.f32 %v1306, %v1327
          %v1355 = vmax.f32 %v1307, %v1329
          %v1356 = vmax.f32 %v1308, %v1331
          %v1357 = vmax.f32 %v1309, %v1333
          %v1358 = vmax.f32 %v1310, %v1335
          %v1359 = vmax.f32 %v1311, %v1337
          %v1360 = vmax.f32 %v1312, %v1339
          %v1361 = vmax.f32 %v1313, %v1341
          %v1362 = vmax.f32 %v1314, %v1343
          %v1363 = vmax.f32 %v1315, %v1345
          %v1364 = vmax.f32 %v1316, %v1347
          %v1365 = vmax.f32 %v1317, %v1349
          %v1366 = vsub.f32 %v1302, %v1350
          %v1367 = vsub.f32 %v1303, %v1351
          %v1368 = vsub.f32 %v1304, %v1352
          %v1369 = vsub.f32 %v1305, %v1353
          %v1370 = vsub.f32 %v1306, %v1354
          %v1371 = vsub.f32 %v1307, %v1355
          %v1372 = vsub.f32 %v1308, %v1356
          %v1373 = vsub.f32 %v1309, %v1357
          %v1374 = vsub.f32 %v1310, %v1358
          %v1375 = vsub.f32 %v1311, %v1359
          %v1376 = vsub.f32 %v1312, %v1360
          %v1377 = vsub.f32 %v1313, %v1361
          %v1378 = vsub.f32 %v1314, %v1362
          %v1379 = vsub.f32 %v1315, %v1363
          %v1380 = vsub.f32 %v1316, %v1364
          %v1381 = vsub.f32 %v1317, %v1365
          %v1382 = vmul.f32 %v1366, 1.442695
          %v1383 = vpow.pop %v1382
          %v1384 = vmul.f32 %v1367, 1.442695
          %v1385 = vpow.pop %v1384
          %v1386 = vmul.f32 %v1368, 1.442695
          %v1387 = vpow.pop %v1386
          %v1388 = vmul.f32 %v1369, 1.442695
          %v1389 = vpow.pop %v1388
          %v1390 = vmul.f32 %v1370, 1.442695
          %v1391 = vpow.pop %v1390
          %v1392 = vmul.f32 %v1371, 1.442695
          %v1393 = vpow.pop %v1392
          %v1394 = vmul.f32 %v1372, 1.442695
          %v1395 = vpow.pop %v1394
          %v1396 = vmul.f32 %v1373, 1.442695
          %v1397 = vpow.pop %v1396
          %v1398 = vmul.f32 %v1374, 1.442695
          %v1399 = vpow.pop %v1398
          %v1400 = vmul.f32 %v1375, 1.442695
          %v1401 = vpow.pop %v1400
          %v1402 = vmul.f32 %v1376, 1.442695
          %v1403 = vpow.pop %v1402
          %v1404 = vmul.f32 %v1377, 1.442695
          %v1405 = vpow.pop %v1404
          %v1406 = vmul.f32 %v1378, 1.442695
          %v1407 = vpow.pop %v1406
          %v1408 = vmul.f32 %v1379, 1.442695
          %v1409 = vpow.pop %v1408
          %v1410 = vmul.f32 %v1380, 1.442695
          %v1411 = vpow.pop %v1410
          %v1412 = vmul.f32 %v1381, 1.442695
          %v1413 = vpow.pop %v1412
          %1415 = vset.pattern.permute.xlu0 0
          %1416 = vperm.xlu0 %1415, %v1350
          %v1417 = vpop.permute.xlu0 %1416
          %1420 = vset.pattern.permute.xlu0 0
          %1421 = vperm.xlu0 %1420, %v1351
          %v1422 = vpop.permute.xlu0 %1421
          %1425 = vset.pattern.permute.xlu0 0
          %1426 = vperm.xlu0 %1425, %v1352
          %v1427 = vpop.permute.xlu0 %1426
          %1430 = vset.pattern.permute.xlu0 0
          %1431 = vperm.xlu0 %1430, %v1353
          %v1432 = vpop.permute.xlu0 %1431
          %1435 = vset.pattern.permute.xlu0 0
          %1436 = vperm.xlu0 %1435, %v1354
          %v1437 = vpop.permute.xlu0 %1436
          %1440 = vset.pattern.permute.xlu0 0
          %1441 = vperm.xlu0 %1440, %v1355
          %v1442 = vpop.permute.xlu0 %1441
          %1445 = vset.pattern.permute.xlu0 0
          %1446 = vperm.xlu0 %1445, %v1356
          %v1447 = vpop.permute.xlu0 %1446
          %1450 = vset.pattern.permute.xlu0 0
          %1451 = vperm.xlu0 %1450, %v1357
          %v1452 = vpop.permute.xlu0 %1451
          %1455 = vset.pattern.permute.xlu0 0
          %1456 = vperm.xlu0 %1455, %v1358
          %v1457 = vpop.permute.xlu0 %1456
          %1460 = vset.pattern.permute.xlu0 0
          %1461 = vperm.xlu0 %1460, %v1359
          %v1462 = vpop.permute.xlu0 %1461
          %1465 = vset.pattern.permute.xlu0 0
          %1466 = vperm.xlu0 %1465, %v1360
          %v1467 = vpop.permute.xlu0 %1466
          %1470 = vset.pattern.permute.xlu0 0
          %1471 = vperm.xlu0 %1470, %v1361
          %v1472 = vpop.permute.xlu0 %1471
          %1475 = vset.pattern.permute.xlu0 0
          %1476 = vperm.xlu0 %1475, %v1362
          %v1477 = vpop.permute.xlu0 %1476
          %1480 = vset.pattern.permute.xlu0 0
          %1481 = vperm.xlu0 %1480, %v1363
          %v1482 = vpop.permute.xlu0 %1481
          %1485 = vset.pattern.permute.xlu0 0
          %1486 = vperm.xlu0 %1485, %v1364
          %v1487 = vpop.permute.xlu0 %1486
          %1490 = vset.pattern.permute.xlu0 0
          %1491 = vperm.xlu0 %1490, %v1365
          %v1492 = vpop.permute.xlu0 %1491
          %v1494 = vsub.f32 %v1286, %v1417
          %v1495 = vsub.f32 %v1287, %v1422
          %v1496 = vsub.f32 %v1288, %v1427
          %v1497 = vsub.f32 %v1289, %v1432
          %v1498 = vsub.f32 %v1290, %v1437
          %v1499 = vsub.f32 %v1291, %v1442
          %v1500 = vsub.f32 %v1292, %v1447
          %v1501 = vsub.f32 %v1293, %v1452
          %v1502 = vsub.f32 %v1294, %v1457
          %v1503 = vsub.f32 %v1295, %v1462
          %v1504 = vsub.f32 %v1296, %v1467
          %v1505 = vsub.f32 %v1297, %v1472
          %v1506 = vsub.f32 %v1298, %v1477
          %v1507 = vsub.f32 %v1299, %v1482
          %v1508 = vsub.f32 %v1300, %v1487
          %v1509 = vsub.f32 %v1301, %v1492
          %v1510 = vmul.f32 %v1494, 1.442695
          %v1511 = vpow.pop %v1510
          %v1512 = vmul.f32 %v1495, 1.442695
          %v1513 = vpow.pop %v1512
          %v1514 = vmul.f32 %v1496, 1.442695
          %v1515 = vpow.pop %v1514
          %v1516 = vmul.f32 %v1497, 1.442695
          %v1517 = vpow.pop %v1516
          %v1518 = vmul.f32 %v1498, 1.442695
          %v1519 = vpow.pop %v1518
          %v1520 = vmul.f32 %v1499, 1.442695
          %v1521 = vpow.pop %v1520
          %v1522 = vmul.f32 %v1500, 1.442695
          %v1523 = vpow.pop %v1522
          %v1524 = vmul.f32 %v1501, 1.442695
          %v1525 = vpow.pop %v1524
          %v1526 = vmul.f32 %v1502, 1.442695
          %v1527 = vpow.pop %v1526
          %v1528 = vmul.f32 %v1503, 1.442695
          %v1529 = vpow.pop %v1528
          %v1530 = vmul.f32 %v1504, 1.442695
          %v1531 = vpow.pop %v1530
          %v1532 = vmul.f32 %v1505, 1.442695
          %v1533 = vpow.pop %v1532
          %v1534 = vmul.f32 %v1506, 1.442695
          %v1535 = vpow.pop %v1534
          %v1536 = vmul.f32 %v1507, 1.442695
          %v1537 = vpow.pop %v1536
          %v1538 = vmul.f32 %v1508, 1.442695
          %v1539 = vpow.pop %v1538
          %v1540 = vmul.f32 %v1509, 1.442695
          %v1541 = vpow.pop %v1540
          %v1542 = vld [vmem:[#allocation4] sm:$0xff]
          %v1543 = vld [vmem:[#allocation4 + $0x8] sm:$0xff]
          %v1544 = vld [vmem:[#allocation4 + $0x10] sm:$0xff]
          %v1545 = vld [vmem:[#allocation4 + $0x18] sm:$0xff]
          %v1546 = vld [vmem:[#allocation4 + $0x20] sm:$0xff]
          %v1547 = vld [vmem:[#allocation4 + $0x28] sm:$0xff]
          %v1548 = vld [vmem:[#allocation4 + $0x30] sm:$0xff]
          %v1549 = vld [vmem:[#allocation4 + $0x38] sm:$0xff]
          %v1550 = vld [vmem:[#allocation4 + $0x40] sm:$0xff]
          %v1551 = vld [vmem:[#allocation4 + $0x48] sm:$0xff]
          %v1552 = vld [vmem:[#allocation4 + $0x50] sm:$0xff]
          %v1553 = vld [vmem:[#allocation4 + $0x58] sm:$0xff]
          %v1554 = vld [vmem:[#allocation4 + $0x60] sm:$0xff]
          %v1555 = vld [vmem:[#allocation4 + $0x68] sm:$0xff]
          %v1556 = vld [vmem:[#allocation4 + $0x70] sm:$0xff]
          %v1557 = vld [vmem:[#allocation4 + $0x78] sm:$0xff]
          %v1558 = vmul.f32 %v1383, %v1542
          %v1559 = vmul.f32 %v1385, %v1543
          %v1560 = vmul.f32 %v1387, %v1544
          %v1561 = vmul.f32 %v1389, %v1545
          %v1562 = vmul.f32 %v1391, %v1546
          %v1563 = vmul.f32 %v1393, %v1547
          %v1564 = vmul.f32 %v1395, %v1548
          %v1565 = vmul.f32 %v1397, %v1549
          %v1566 = vmul.f32 %v1399, %v1550
          %v1567 = vmul.f32 %v1401, %v1551
          %v1568 = vmul.f32 %v1403, %v1552
          %v1569 = vmul.f32 %v1405, %v1553
          %v1570 = vmul.f32 %v1407, %v1554
          %v1571 = vmul.f32 %v1409, %v1555
          %v1572 = vmul.f32 %v1411, %v1556
          %v1573 = vmul.f32 %v1413, %v1557
          %1574 = vadd.xlane.f32.xlu0 %v1511
          %v1575 = vpop.xlane.xlu0 %1574
          %1576 = vadd.xlane.f32.xlu0 %v1513
          %v1577 = vpop.xlane.xlu0 %1576
          %1578 = vadd.xlane.f32.xlu0 %v1515
          %v1579 = vpop.xlane.xlu0 %1578
          %1580 = vadd.xlane.f32.xlu0 %v1517
          %v1581 = vpop.xlane.xlu0 %1580
          %1582 = vadd.xlane.f32.xlu0 %v1519
          %v1583 = vpop.xlane.xlu0 %1582
          %1584 = vadd.xlane.f32.xlu0 %v1521
          %v1585 = vpop.xlane.xlu0 %1584
          %1586 = vadd.xlane.f32.xlu0 %v1523
          %v1587 = vpop.xlane.xlu0 %1586
          %1588 = vadd.xlane.f32.xlu0 %v1525
          %v1589 = vpop.xlane.xlu0 %1588
          %1590 = vadd.xlane.f32.xlu0 %v1527
          %v1591 = vpop.xlane.xlu0 %1590
          %1592 = vadd.xlane.f32.xlu0 %v1529
          %v1593 = vpop.xlane.xlu0 %1592
          %1594 = vadd.xlane.f32.xlu0 %v1531
          %v1595 = vpop.xlane.xlu0 %1594
          %1596 = vadd.xlane.f32.xlu0 %v1533
          %v1597 = vpop.xlane.xlu0 %1596
          %1598 = vadd.xlane.f32.xlu0 %v1535
          %v1599 = vpop.xlane.xlu0 %1598
          %1600 = vadd.xlane.f32.xlu0 %v1537
          %v1601 = vpop.xlane.xlu0 %1600
          %1602 = vadd.xlane.f32.xlu0 %v1539
          %v1603 = vpop.xlane.xlu0 %1602
          %1604 = vadd.xlane.f32.xlu0 %v1541
          %v1605 = vpop.xlane.xlu0 %1604
          %v1606 = vadd.f32 %v1558, %v1575
          %v1607 = vadd.f32 %v1559, %v1577
          %v1608 = vadd.f32 %v1560, %v1579
          %v1609 = vadd.f32 %v1561, %v1581
          %v1610 = vadd.f32 %v1562, %v1583
          %v1611 = vadd.f32 %v1563, %v1585
          %v1612 = vadd.f32 %v1564, %v1587
          %v1613 = vadd.f32 %v1565, %v1589
          %v1614 = vadd.f32 %v1566, %v1591
          %v1615 = vadd.f32 %v1567, %v1593
          %v1616 = vadd.f32 %v1568, %v1595
          %v1617 = vadd.f32 %v1569, %v1597
          %v1618 = vadd.f32 %v1570, %v1599
          %v1619 = vadd.f32 %v1571, %v1601
          %v1620 = vadd.f32 %v1572, %v1603
          %v1621 = vadd.f32 %v1573, %v1605
          %vm1622 = vcmask 7168
          %1623 = vst.msk [vmem:[#allocation4] sm:$0xff] %vm1622, %v1606
          %1624 = vst.msk [vmem:[#allocation4 + $0x8] sm:$0xff] %vm1622, %v1607
          %1625 = vst.msk [vmem:[#allocation4 + $0x10] sm:$0xff] %vm1622, %v1608
          %1626 = vst.msk [vmem:[#allocation4 + $0x18] sm:$0xff] %vm1622, %v1609
          %1627 = vst.msk [vmem:[#allocation4 + $0x20] sm:$0xff] %vm1622, %v1610
          %1628 = vst.msk [vmem:[#allocation4 + $0x28] sm:$0xff] %vm1622, %v1611
          %1629 = vst.msk [vmem:[#allocation4 + $0x30] sm:$0xff] %vm1622, %v1612
          %1630 = vst.msk [vmem:[#allocation4 + $0x38] sm:$0xff] %vm1622, %v1613
          %1631 = vst.msk [vmem:[#allocation4 + $0x40] sm:$0xff] %vm1622, %v1614
          %1632 = vst.msk [vmem:[#allocation4 + $0x48] sm:$0xff] %vm1622, %v1615
          %1633 = vst.msk [vmem:[#allocation4 + $0x50] sm:$0xff] %vm1622, %v1616
          %1634 = vst.msk [vmem:[#allocation4 + $0x58] sm:$0xff] %vm1622, %v1617
          %1635 = vst.msk [vmem:[#allocation4 + $0x60] sm:$0xff] %vm1622, %v1618
          %1636 = vst.msk [vmem:[#allocation4 + $0x68] sm:$0xff] %vm1622, %v1619
          %1637 = vst.msk [vmem:[#allocation4 + $0x70] sm:$0xff] %vm1622, %v1620
          %1638 = vst.msk [vmem:[#allocation4 + $0x78] sm:$0xff] %vm1622, %v1621
          %v1639 = vld [vmem:[#allocation5] sm:$0xff]
          %v1640 = vld [vmem:[#allocation5 + $0x8] sm:$0xff]
          %v1641 = vld [vmem:[#allocation5 + $0x10] sm:$0xff]
          %v1642 = vld [vmem:[#allocation5 + $0x18] sm:$0xff]
          %v1643 = vld [vmem:[#allocation5 + $0x20] sm:$0xff]
          %v1644 = vld [vmem:[#allocation5 + $0x28] sm:$0xff]
          %v1645 = vld [vmem:[#allocation5 + $0x30] sm:$0xff]
          %v1646 = vld [vmem:[#allocation5 + $0x38] sm:$0xff]
          %v1647 = vld [vmem:[#allocation5 + $0x40] sm:$0xff]
          %v1648 = vld [vmem:[#allocation5 + $0x48] sm:$0xff]
          %v1649 = vld [vmem:[#allocation5 + $0x50] sm:$0xff]
          %v1650 = vld [vmem:[#allocation5 + $0x58] sm:$0xff]
          %v1651 = vld [vmem:[#allocation5 + $0x60] sm:$0xff]
          %v1652 = vld [vmem:[#allocation5 + $0x68] sm:$0xff]
          %v1653 = vld [vmem:[#allocation5 + $0x70] sm:$0xff]
          %v1654 = vld [vmem:[#allocation5 + $0x78] sm:$0xff]
          %1656 = vset.pattern.permute.xlu0 0
          %1657 = vperm.xlu0 %1656, %v1383
          %v1658 = vpop.permute.xlu0 %1657
          %1661 = vset.pattern.permute.xlu0 0
          %1662 = vperm.xlu0 %1661, %v1385
          %v1663 = vpop.permute.xlu0 %1662
          %1666 = vset.pattern.permute.xlu0 0
          %1667 = vperm.xlu0 %1666, %v1387
          %v1668 = vpop.permute.xlu0 %1667
          %1671 = vset.pattern.permute.xlu0 0
          %1672 = vperm.xlu0 %1671, %v1389
          %v1673 = vpop.permute.xlu0 %1672
          %1676 = vset.pattern.permute.xlu0 0
          %1677 = vperm.xlu0 %1676, %v1391
          %v1678 = vpop.permute.xlu0 %1677
          %1681 = vset.pattern.permute.xlu0 0
          %1682 = vperm.xlu0 %1681, %v1393
          %v1683 = vpop.permute.xlu0 %1682
          %1686 = vset.pattern.permute.xlu0 0
          %1687 = vperm.xlu0 %1686, %v1395
          %v1688 = vpop.permute.xlu0 %1687
          %1691 = vset.pattern.permute.xlu0 0
          %1692 = vperm.xlu0 %1691, %v1397
          %v1693 = vpop.permute.xlu0 %1692
          %1696 = vset.pattern.permute.xlu0 0
          %1697 = vperm.xlu0 %1696, %v1399
          %v1698 = vpop.permute.xlu0 %1697
          %1701 = vset.pattern.permute.xlu0 0
          %1702 = vperm.xlu0 %1701, %v1401
          %v1703 = vpop.permute.xlu0 %1702
          %1706 = vset.pattern.permute.xlu0 0
          %1707 = vperm.xlu0 %1706, %v1403
          %v1708 = vpop.permute.xlu0 %1707
          %1711 = vset.pattern.permute.xlu0 0
          %1712 = vperm.xlu0 %1711, %v1405
          %v1713 = vpop.permute.xlu0 %1712
          %1716 = vset.pattern.permute.xlu0 0
          %1717 = vperm.xlu0 %1716, %v1407
          %v1718 = vpop.permute.xlu0 %1717
          %1721 = vset.pattern.permute.xlu0 0
          %1722 = vperm.xlu0 %1721, %v1409
          %v1723 = vpop.permute.xlu0 %1722
          %1726 = vset.pattern.permute.xlu0 0
          %1727 = vperm.xlu0 %1726, %v1411
          %v1728 = vpop.permute.xlu0 %1727
          %1731 = vset.pattern.permute.xlu0 0
          %1732 = vperm.xlu0 %1731, %v1413
          %v1733 = vpop.permute.xlu0 %1732
          %v1735 = vmul.f32 %v1658, %v1639
          %v1736 = vmul.f32 %v1663, %v1640
          %v1737 = vmul.f32 %v1668, %v1641
          %v1738 = vmul.f32 %v1673, %v1642
          %v1739 = vmul.f32 %v1678, %v1643
          %v1740 = vmul.f32 %v1683, %v1644
          %v1741 = vmul.f32 %v1688, %v1645
          %v1742 = vmul.f32 %v1693, %v1646
          %v1743 = vmul.f32 %v1698, %v1647
          %v1744 = vmul.f32 %v1703, %v1648
          %v1745 = vmul.f32 %v1708, %v1649
          %v1746 = vmul.f32 %v1713, %v1650
          %v1747 = vmul.f32 %v1718, %v1651
          %v1748 = vmul.f32 %v1723, %v1652
          %v1749 = vmul.f32 %v1728, %v1653
          %v1750 = vmul.f32 %v1733, %v1654
          %v1751 = vpack.c.bf16 %v1513, %v1511
          %v1752 = vpack.c.bf16 %v1517, %v1515
          %v1753 = vpack.c.bf16 %v1521, %v1519
          %v1754 = vpack.c.bf16 %v1525, %v1523
          %v1755 = vpack.c.bf16 %v1529, %v1527
          %v1756 = vpack.c.bf16 %v1533, %v1531
          %v1757 = vpack.c.bf16 %v1537, %v1535
          %v1758 = vpack.c.bf16 %v1541, %v1539
          %1767 = vrot.lane.b32.xlu0 %v1070, 64
          %v1768 = vpop.permute.xlu0 %1767
          %1769 = vrot.lane.b32.xlu0 %v1071, 64
          %v1770 = vpop.permute.xlu0 %1769
          %1771 = vrot.lane.b32.xlu0 %v1072, 64
          %v1772 = vpop.permute.xlu0 %1771
          %1773 = vrot.lane.b32.xlu0 %v1073, 64
          %v1774 = vpop.permute.xlu0 %1773
          %1775 = vrot.lane.b32.xlu0 %v1074, 64
          %v1776 = vpop.permute.xlu0 %1775
          %1777 = vrot.lane.b32.xlu0 %v1075, 64
          %v1778 = vpop.permute.xlu0 %1777
          %1779 = vrot.lane.b32.xlu0 %v1076, 64
          %v1780 = vpop.permute.xlu0 %1779
          %1781 = vrot.lane.b32.xlu0 %v1077, 64
          %v1782 = vpop.permute.xlu0 %1781
          %1791 = vmatprep.subr.bf16.mxu0 0
          %1792 = vmatpush1.bf16.msra.mxu0 %v1768
          %1793 = vmatprep.subr.bf16.mxu0 0
          %1794 = vmatpush1.bf16.msra.mxu0 %v1770
          %1795 = vmatprep.subr.bf16.mxu0 0
          %1796 = vmatpush1.bf16.msra.mxu0 %v1772
          %1797 = vmatprep.subr.bf16.mxu0 0
          %1798 = vmatpush1.bf16.msra.mxu0 %v1774
          %1799 = vmatprep.subr.bf16.mxu0 0
          %1800 = vmatpush1.bf16.msra.mxu0 %v1776
          %1801 = vmatprep.subr.bf16.mxu0 0
          %1802 = vmatpush1.bf16.msra.mxu0 %v1778
          %1803 = vmatprep.subr.bf16.mxu0 0
          %1804 = vmatpush1.bf16.msra.mxu0 %v1780
          %1805 = vmatprep.subr.bf16.mxu0 0
          %1806 = vmatpush1.bf16.msra.mxu0 %v1782
          %1807 = vmatprep.subr.bf16.mxu0 0
          %1808 = vmatpush1.bf16.msra.mxu0 0
          %1809 = vmatprep.subr.bf16.mxu0 0
          %1810 = vmatpush1.bf16.msra.mxu0 0
          %1811 = vmatprep.subr.bf16.mxu0 0
          %1812 = vmatpush1.bf16.msra.mxu0 0
          %1813 = vmatprep.subr.bf16.mxu0 0
          %1814 = vmatpush1.bf16.msra.mxu0 0
          %1815 = vmatprep.subr.bf16.mxu0 0
          %1816 = vmatpush1.bf16.msra.mxu0 0
          %1817 = vmatprep.subr.bf16.mxu0 0
          %1818 = vmatpush1.bf16.msra.mxu0 0
          %1819 = vmatprep.subr.bf16.mxu0 0
          %1820 = vmatpush1.bf16.msra.mxu0 0
          %1821 = vmatprep.subr.bf16.mxu0 0
          %1822 = vmatpush1.bf16.msra.mxu0 0
          %1823 = vmatprep.mubr.bf16.mxu0 0
          %1824 = vmatmul.mubr.bf16.gmra.mrb[0].mxu0 %v1751
          %v1825 = vpop.f32.mrb[0].mxu0
          %v1826 = vadd.f32 0.0, %v1825
          %v1827 = vpop.f32.mrb[0].mxu0
          %v1828 = vpop.f32.mrb[0].mxu0
          %v1829 = vadd.f32 0.0, %v1828
          %v1830 = vpop.f32.mrb[0].mxu0
          %1831 = vmatprep.mubr.bf16.mxu0 0
          %1832 = vmatmul.mubr.bf16.gmra.mrb[0].mxu0 %v1752
          %v1833 = vpop.f32.mrb[0].mxu0
          %v1834 = vadd.f32 0.0, %v1833
          %v1835 = vpop.f32.mrb[0].mxu0
          %v1836 = vpop.f32.mrb[0].mxu0
          %v1837 = vadd.f32 0.0, %v1836
          %v1838 = vpop.f32.mrb[0].mxu0
          %1839 = vmatprep.mubr.bf16.mxu0 0
          %1840 = vmatmul.mubr.bf16.gmra.mrb[0].mxu0 %v1753
          %v1841 = vpop.f32.mrb[0].mxu0
          %v1842 = vadd.f32 0.0, %v1841
          %v1843 = vpop.f32.mrb[0].mxu0
          %v1844 = vpop.f32.mrb[0].mxu0
          %v1845 = vadd.f32 0.0, %v1844
          %v1846 = vpop.f32.mrb[0].mxu0
          %1847 = vmatprep.mubr.bf16.mxu0 0
          %1848 = vmatmul.mubr.bf16.gmra.mrb[0].mxu0 %v1754
          %v1849 = vpop.f32.mrb[0].mxu0
          %v1850 = vadd.f32 0.0, %v1849
          %v1851 = vpop.f32.mrb[0].mxu0
          %v1852 = vpop.f32.mrb[0].mxu0
          %v1853 = vadd.f32 0.0, %v1852
          %v1854 = vpop.f32.mrb[0].mxu0
          %1855 = vmatprep.mubr.bf16.mxu0 0
          %1856 = vmatmul.mubr.bf16.gmra.mrb[0].mxu0 %v1755
          %v1857 = vpop.f32.mrb[0].mxu0
          %v1858 = vadd.f32 0.0, %v1857
          %v1859 = vpop.f32.mrb[0].mxu0
          %v1860 = vpop.f32.mrb[0].mxu0
          %v1861 = vadd.f32 0.0, %v1860
          %v1862 = vpop.f32.mrb[0].mxu0
          %1863 = vmatprep.mubr.bf16.mxu0 0
          %1864 = vmatmul.mubr.bf16.gmra.mrb[0].mxu0 %v1756
          %v1865 = vpop.f32.mrb[0].mxu0
          %v1866 = vadd.f32 0.0, %v1865
          %v1867 = vpop.f32.mrb[0].mxu0
          %v1868 = vpop.f32.mrb[0].mxu0
          %v1869 = vadd.f32 0.0, %v1868
          %v1870 = vpop.f32.mrb[0].mxu0
          %1871 = vmatprep.mubr.bf16.mxu0 0
          %1872 = vmatmul.mubr.bf16.gmra.mrb[0].mxu0 %v1757
          %v1873 = vpop.f32.mrb[0].mxu0
          %v1874 = vadd.f32 0.0, %v1873
          %v1875 = vpop.f32.mrb[0].mxu0
          %v1876 = vpop.f32.mrb[0].mxu0
          %v1877 = vadd.f32 0.0, %v1876
          %v1878 = vpop.f32.mrb[0].mxu0
          %1879 = vmatprep.mubr.bf16.mxu0 0
          %1880 = vmatmul.mubr.bf16.gmra.mrb[0].mxu0 %v1758
          %v1881 = vpop.f32.mrb[0].mxu0
          %v1882 = vadd.f32 0.0, %v1881
          %v1883 = vpop.f32.mrb[0].mxu0
          %v1884 = vpop.f32.mrb[0].mxu0
          %v1885 = vadd.f32 0.0, %v1884
          %v1886 = vpop.f32.mrb[0].mxu0
          %1887 = vdwg.mxu0
          %v1888 = vadd.f32 %v1735, %v1826
          %v1889 = vadd.f32 %v1736, %v1829
          %v1890 = vadd.f32 %v1737, %v1834
          %v1891 = vadd.f32 %v1738, %v1837
          %v1892 = vadd.f32 %v1739, %v1842
          %v1893 = vadd.f32 %v1740, %v1845
          %v1894 = vadd.f32 %v1741, %v1850
          %v1895 = vadd.f32 %v1742, %v1853
          %v1896 = vadd.f32 %v1743, %v1858
          %v1897 = vadd.f32 %v1744, %v1861
          %v1898 = vadd.f32 %v1745, %v1866
          %v1899 = vadd.f32 %v1746, %v1869
          %v1900 = vadd.f32 %v1747, %v1874
          %v1901 = vadd.f32 %v1748, %v1877
          %v1902 = vadd.f32 %v1749, %v1882
          %v1903 = vadd.f32 %v1750, %v1885
          %1904 = vst.msk [vmem:[#allocation5] sm:$0xff] %vm1086, %v1888
          %1905 = vst.msk [vmem:[#allocation5 + $0x8] sm:$0xff] %vm1086, %v1889
          %1906 = vst.msk [vmem:[#allocation5 + $0x10] sm:$0xff] %vm1086, %v1890
          %1907 = vst.msk [vmem:[#allocation5 + $0x18] sm:$0xff] %vm1086, %v1891
          %1908 = vst.msk [vmem:[#allocation5 + $0x20] sm:$0xff] %vm1086, %v1892
          %1909 = vst.msk [vmem:[#allocation5 + $0x28] sm:$0xff] %vm1086, %v1893
          %1910 = vst.msk [vmem:[#allocation5 + $0x30] sm:$0xff] %vm1086, %v1894
          %1911 = vst.msk [vmem:[#allocation5 + $0x38] sm:$0xff] %vm1086, %v1895
          %1912 = vst.msk [vmem:[#allocation5 + $0x40] sm:$0xff] %vm1086, %v1896
          %1913 = vst.msk [vmem:[#allocation5 + $0x48] sm:$0xff] %vm1086, %v1897
          %1914 = vst.msk [vmem:[#allocation5 + $0x50] sm:$0xff] %vm1086, %v1898
          %1915 = vst.msk [vmem:[#allocation5 + $0x58] sm:$0xff] %vm1086, %v1899
          %1916 = vst.msk [vmem:[#allocation5 + $0x60] sm:$0xff] %vm1086, %v1900
          %1917 = vst.msk [vmem:[#allocation5 + $0x68] sm:$0xff] %vm1086, %v1901
          %1918 = vst.msk [vmem:[#allocation5 + $0x70] sm:$0xff] %vm1086, %v1902
          %1919 = vst.msk [vmem:[#allocation5 + $0x78] sm:$0xff] %vm1086, %v1903
          %1920 = vst.msk [vmem:[#allocation3] sm:$0xff] %vm1622, %v1350
          %1921 = vst.msk [vmem:[#allocation3 + $0x8] sm:$0xff] %vm1622, %v1351
          %1922 = vst.msk [vmem:[#allocation3 + $0x10] sm:$0xff] %vm1622, %v1352
          %1923 = vst.msk [vmem:[#allocation3 + $0x18] sm:$0xff] %vm1622, %v1353
          %1924 = vst.msk [vmem:[#allocation3 + $0x20] sm:$0xff] %vm1622, %v1354
          %1925 = vst.msk [vmem:[#allocation3 + $0x28] sm:$0xff] %vm1622, %v1355
          %1926 = vst.msk [vmem:[#allocation3 + $0x30] sm:$0xff] %vm1622, %v1356
          %1927 = vst.msk [vmem:[#allocation3 + $0x38] sm:$0xff] %vm1622, %v1357
          %1928 = vst.msk [vmem:[#allocation3 + $0x40] sm:$0xff] %vm1622, %v1358
          %1929 = vst.msk [vmem:[#allocation3 + $0x48] sm:$0xff] %vm1622, %v1359
          %1930 = vst.msk [vmem:[#allocation3 + $0x50] sm:$0xff] %vm1622, %v1360
          %1931 = vst.msk [vmem:[#allocation3 + $0x58] sm:$0xff] %vm1622, %v1361
          %1932 = vst.msk [vmem:[#allocation3 + $0x60] sm:$0xff] %vm1622, %v1362
          %1933 = vst.msk [vmem:[#allocation3 + $0x68] sm:$0xff] %vm1622, %v1363
          %1934 = vst.msk [vmem:[#allocation3 + $0x70] sm:$0xff] %vm1622, %v1364
          %1935 = vst.msk [vmem:[#allocation3 + $0x78] sm:$0xff] %vm1622, %v1365
        $region52: #{tpu_custom_call.1} parent=35 // pred_fallthru
          _
        %p1936 = scmp.eq.s32.totalorder %s28, 1
        // Predicated region
        $region53: #{tpu_custom_call.1} parent=35 // pred_check
          %p1937 = pneg %p1936
        $region54: #{tpu_custom_call.1} parent=35 // pred_check_branch
          %1939 = sbr.rel (%p1937) target = $region56
        $region55: #{tpu_custom_call.1} parent=35 // pred_region
          %v1940 = vld [vmem:[#allocation4] sm:$0xff]
          %v1941 = vld [vmem:[#allocation4 + $0x8] sm:$0xff]
          %v1942 = vld [vmem:[#allocation4 + $0x10] sm:$0xff]
          %v1943 = vld [vmem:[#allocation4 + $0x18] sm:$0xff]
          %v1944 = vld [vmem:[#allocation4 + $0x20] sm:$0xff]
          %v1945 = vld [vmem:[#allocation4 + $0x28] sm:$0xff]
          %v1946 = vld [vmem:[#allocation4 + $0x30] sm:$0xff]
          %v1947 = vld [vmem:[#allocation4 + $0x38] sm:$0xff]
          %v1948 = vld [vmem:[#allocation4 + $0x40] sm:$0xff]
          %v1949 = vld [vmem:[#allocation4 + $0x48] sm:$0xff]
          %v1950 = vld [vmem:[#allocation4 + $0x50] sm:$0xff]
          %v1951 = vld [vmem:[#allocation4 + $0x58] sm:$0xff]
          %v1952 = vld [vmem:[#allocation4 + $0x60] sm:$0xff]
          %v1953 = vld [vmem:[#allocation4 + $0x68] sm:$0xff]
          %v1954 = vld [vmem:[#allocation4 + $0x70] sm:$0xff]
          %v1955 = vld [vmem:[#allocation4 + $0x78] sm:$0xff]
          %v1956 = vrcp.pop %v1940
          %v1957 = vrcp.pop %v1941
          %v1958 = vrcp.pop %v1942
          %v1959 = vrcp.pop %v1943
          %v1960 = vrcp.pop %v1944
          %v1961 = vrcp.pop %v1945
          %v1962 = vrcp.pop %v1946
          %v1963 = vrcp.pop %v1947
          %v1964 = vrcp.pop %v1948
          %v1965 = vrcp.pop %v1949
          %v1966 = vrcp.pop %v1950
          %v1967 = vrcp.pop %v1951
          %v1968 = vrcp.pop %v1952
          %v1969 = vrcp.pop %v1953
          %v1970 = vrcp.pop %v1954
          %v1971 = vrcp.pop %v1955
          %v1972 = vld [vmem:[#allocation5] sm:$0xff]
          %v1973 = vld [vmem:[#allocation5 + $0x8] sm:$0xff]
          %v1974 = vld [vmem:[#allocation5 + $0x10] sm:$0xff]
          %v1975 = vld [vmem:[#allocation5 + $0x18] sm:$0xff]
          %v1976 = vld [vmem:[#allocation5 + $0x20] sm:$0xff]
          %v1977 = vld [vmem:[#allocation5 + $0x28] sm:$0xff]
          %v1978 = vld [vmem:[#allocation5 + $0x30] sm:$0xff]
          %v1979 = vld [vmem:[#allocation5 + $0x38] sm:$0xff]
          %v1980 = vld [vmem:[#allocation5 + $0x40] sm:$0xff]
          %v1981 = vld [vmem:[#allocation5 + $0x48] sm:$0xff]
          %v1982 = vld [vmem:[#allocation5 + $0x50] sm:$0xff]
          %v1983 = vld [vmem:[#allocation5 + $0x58] sm:$0xff]
          %v1984 = vld [vmem:[#allocation5 + $0x60] sm:$0xff]
          %v1985 = vld [vmem:[#allocation5 + $0x68] sm:$0xff]
          %v1986 = vld [vmem:[#allocation5 + $0x70] sm:$0xff]
          %v1987 = vld [vmem:[#allocation5 + $0x78] sm:$0xff]
          %1989 = vset.pattern.permute.xlu0 0
          %1990 = vperm.xlu0 %1989, %v1956
          %v1991 = vpop.permute.xlu0 %1990
          %1994 = vset.pattern.permute.xlu0 0
          %1995 = vperm.xlu0 %1994, %v1957
          %v1996 = vpop.permute.xlu0 %1995
          %1999 = vset.pattern.permute.xlu0 0
          %2000 = vperm.xlu0 %1999, %v1958
          %v2001 = vpop.permute.xlu0 %2000
          %2004 = vset.pattern.permute.xlu0 0
          %2005 = vperm.xlu0 %2004, %v1959
          %v2006 = vpop.permute.xlu0 %2005
          %2009 = vset.pattern.permute.xlu0 0
          %2010 = vperm.xlu0 %2009, %v1960
          %v2011 = vpop.permute.xlu0 %2010
          %2014 = vset.pattern.permute.xlu0 0
          %2015 = vperm.xlu0 %2014, %v1961
          %v2016 = vpop.permute.xlu0 %2015
          %2019 = vset.pattern.permute.xlu0 0
          %2020 = vperm.xlu0 %2019, %v1962
          %v2021 = vpop.permute.xlu0 %2020
          %2024 = vset.pattern.permute.xlu0 0
          %2025 = vperm.xlu0 %2024, %v1963
          %v2026 = vpop.permute.xlu0 %2025
          %2029 = vset.pattern.permute.xlu0 0
          %2030 = vperm.xlu0 %2029, %v1964
          %v2031 = vpop.permute.xlu0 %2030
          %2034 = vset.pattern.permute.xlu0 0
          %2035 = vperm.xlu0 %2034, %v1965
          %v2036 = vpop.permute.xlu0 %2035
          %2039 = vset.pattern.permute.xlu0 0
          %2040 = vperm.xlu0 %2039, %v1966
          %v2041 = vpop.permute.xlu0 %2040
          %2044 = vset.pattern.permute.xlu0 0
          %2045 = vperm.xlu0 %2044, %v1967
          %v2046 = vpop.permute.xlu0 %2045
          %2049 = vset.pattern.permute.xlu0 0
          %2050 = vperm.xlu0 %2049, %v1968
          %v2051 = vpop.permute.xlu0 %2050
          %2054 = vset.pattern.permute.xlu0 0
          %2055 = vperm.xlu0 %2054, %v1969
          %v2056 = vpop.permute.xlu0 %2055
          %2059 = vset.pattern.permute.xlu0 0
          %2060 = vperm.xlu0 %2059, %v1970
          %v2061 = vpop.permute.xlu0 %2060
          %2064 = vset.pattern.permute.xlu0 0
          %2065 = vperm.xlu0 %2064, %v1971
          %v2066 = vpop.permute.xlu0 %2065
          %v2068 = vmul.f32 %v1972, %v1991
          %v2069 = vmul.f32 %v1973, %v1996
          %v2070 = vmul.f32 %v1974, %v2001
          %v2071 = vmul.f32 %v1975, %v2006
          %v2072 = vmul.f32 %v1976, %v2011
          %v2073 = vmul.f32 %v1977, %v2016
          %v2074 = vmul.f32 %v1978, %v2021
          %v2075 = vmul.f32 %v1979, %v2026
          %v2076 = vmul.f32 %v1980, %v2031
          %v2077 = vmul.f32 %v1981, %v2036
          %v2078 = vmul.f32 %v1982, %v2041
          %v2079 = vmul.f32 %v1983, %v2046
          %v2080 = vmul.f32 %v1984, %v2051
          %v2081 = vmul.f32 %v1985, %v2056
          %v2082 = vmul.f32 %v1986, %v2061
          %v2083 = vmul.f32 %v1987, %v2066
          %vm2084 = vcmask 523264
          %2085 = vst.msk [vmem:[%s298] sm:$0xff] %vm2084, %v2068
          %2086 = vst.msk [vmem:[%s298 + $0x8] sm:$0xff] %vm2084, %v2069
          %2087 = vst.msk [vmem:[%s298 + $0x10] sm:$0xff] %vm2084, %v2070
          %2088 = vst.msk [vmem:[%s298 + $0x18] sm:$0xff] %vm2084, %v2071
          %2089 = vst.msk [vmem:[%s298 + $0x20] sm:$0xff] %vm2084, %v2072
          %2090 = vst.msk [vmem:[%s298 + $0x28] sm:$0xff] %vm2084, %v2073
          %2091 = vst.msk [vmem:[%s298 + $0x30] sm:$0xff] %vm2084, %v2074
          %2092 = vst.msk [vmem:[%s298 + $0x38] sm:$0xff] %vm2084, %v2075
          %2093 = vst.msk [vmem:[%s298 + $0x40] sm:$0xff] %vm2084, %v2076
          %2094 = vst.msk [vmem:[%s298 + $0x48] sm:$0xff] %vm2084, %v2077
          %2095 = vst.msk [vmem:[%s298 + $0x50] sm:$0xff] %vm2084, %v2078
          %2096 = vst.msk [vmem:[%s298 + $0x58] sm:$0xff] %vm2084, %v2079
          %2097 = vst.msk [vmem:[%s298 + $0x60] sm:$0xff] %vm2084, %v2080
          %2098 = vst.msk [vmem:[%s298 + $0x68] sm:$0xff] %vm2084, %v2081
          %2099 = vst.msk [vmem:[%s298 + $0x70] sm:$0xff] %vm2084, %v2082
          %2100 = vst.msk [vmem:[%s298 + $0x78] sm:$0xff] %vm2084, %v2083
        $region56: #{tpu_custom_call.1} parent=35 // pred_fallthru
          _
        %s2101 = smul.u32 16, %s27
        %p2102 = scmp.lt.s32.totalorder %s26, 1
        %s2103 = scalar_select %p2102, %s26, 1
        %p2104 = scmp.lt.s32.totalorder %s2101, 31
        %s2105 = scalar_select %p2104, %s2101, 31
        %s2106 = smul.addr %s2103, 32
        %s2107 = sadd.s32 %s2105, %s2106
        %s2108 = smul.addr %s2107, 8
        %s2109 = scalar_lea.vmem %s4, %s2108
        // Predicated region
        $region57: #{tpu_custom_call.1} parent=35 // pred_check
          %p2110 = pneg %p158
        $region58: #{tpu_custom_call.1} parent=35 // pred_check_branch
          %2112 = sbr.rel (%p2110) target = $region60
        $region59: #{tpu_custom_call.1} parent=35 // pred_region
          %s2113 = smul.u32 16, %s27
        $region60: #{tpu_custom_call.1} parent=35 // pred_fallthru
          _
      $region36: #{tpu_custom_call.1} parent=5 // pred_fallthru
        _
      %p2114 = scmp.le.s32.totalorder 2, %s16
      // Predicated region
      $region61: #{tpu_custom_call.1} parent=5 // pred_check
        %p2115 = pneg %p2114
      $region62: #{tpu_custom_call.1} parent=5 // pred_check_branch
        %2117 = sbr.rel (%p2115) target = $region64
      $region63: #{tpu_custom_call.1} parent=5 // pred_region
        %s2118 = ssub.s32 %s16, 2
        // Predicated region
        $region65: #{tpu_custom_call.1} parent=63 // pred_check
          %p2119 = pneg %p164
        $region66: #{tpu_custom_call.1} parent=63 // pred_check_branch
          %2121 = sbr.rel (%p2119) target = $region68
        $region67: #{tpu_custom_call.1} parent=63 // pred_region
          %s2122 = smul.u32 16, %s30
          %p2123 = scmp.lt.s32.totalorder %s29, 1
          %s2124 = scalar_select %p2123, %s29, 1
          %p2125 = scmp.lt.s32.totalorder %s2122, 31
          %s2126 = scalar_select %p2125, %s2122, 31
          %s2127 = smul.addr %s2124, 32
          %s2128 = sadd.s32 %s2126, %s2127
          %s2129 = smul.addr %s2128, 8
          %s2130 = scalar_lea.vmem %s4, %s2129
        $region68: #{tpu_custom_call.1} parent=63 // pred_fallthru
          _
      $region64: #{tpu_custom_call.1} parent=5 // pred_fallthru
        _
    $region6: #{tpu_custom_call.1} parent=1 // loop_footer
      %s20 = sadd.s32 1, %s16
    $region7: #{tpu_custom_call.1} parent=1 // loop_footer_branch
      %15 = sbr.rel target = $region3
    $region8: #{tpu_custom_call.1} parent=1 // loop_exit
      _
    %2131 = vsyncpa [#allocation7], 1
    %s2132 = scalar_lea.sflag [#allocation7], 1
    %2133 = vsyncpa %s2132, 1
    %2134 = vsyncpa [#allocation9], 1
    %s2135 = scalar_lea.sflag [#allocation9], 1
    %2136 = vsyncpa %s2135, 1

</llo_original>
